<compile_context>
chip_gen: v7x
topology: tpu7x:2x2x1
jax: 0.10.0
libtpu: 0.0.40
codegen_flags: <defaults>
</compile_context>

<pallas_src>
import jax
import jax.numpy as jnp
import numpy as np
from jax.experimental import pallas as pl
from jax.experimental.pallas import tpu as pltpu

LN_EPS = 1e-5


def _round_up(x, m):
    return ((x + m - 1) // m) * m


def _cdiv(a, b):
    return -(-a // b)


def _tpu_vmem_capacity_bytes():
    # Generation-aware: 128 MiB on v5e/v6e, 64 MiB per TensorCore on v7x.
    try:
        return int(pltpu.get_tpu_info().vmem_capacity_bytes)
    except Exception:
        return 64 * 1024 * 1024          # conservative fallback (v7x per-TC VMEM)


_VMEM_CAPACITY_BYTES = _tpu_vmem_capacity_bytes()
# Leave compiler/internal headroom: request <= 3/4 of physical VMEM.
_VMEM_LIMIT_BYTES = min(_VMEM_CAPACITY_BYTES * 3 // 4, 112 * 1024 * 1024)
_VMEM_BUDGET_BYTES = _VMEM_LIMIT_BYTES * 85 // 100


def _vmem_estimate(A, Sb, E, H):
    """Rough VMEM footprint (bytes) for one grid step."""
    io = 2 * 2 * A * Sb * E * 4                 # double-buffered in + out blocks (<= f32)
    g_scr = A * Sb * 8 * H * 2                  # bf16 fused gate scratch
    h_scr = A * Sb * 2 * H * 2                  # bf16 fwd|bwd hidden scratch
    transient = A * Sb * (8 * H + 2 * E) * 4    # f32 input-proj result + xn/z0 live values
    weights = 2 * ((E * 8 * H + 2 * H * 4 * H + 2 * H * E) * 2 + (8 * H + 3 * E) * 4)
    return io + g_scr + h_scr + transient + weights


def _choose_sb(S, A, E, H, max_sb=256):
    """Balanced batch tile (multiple of 8, <= max_sb) that fits the VMEM budget.

    Uses n_tiles = ceil(S / tile) balancing so that an unlucky S does not pad
    up to Sb-1 wasted rows."""
    n_tiles = max(1, _cdiv(S, max_sb))
    while True:
        sb = min(max_sb, _round_up(_cdiv(S, n_tiles), 8))
        if sb <= 8 or _vmem_estimate(A, sb, E, H) <= _VMEM_BUDGET_BYTES:
            return max(sb, 8)
        n_tiles += 1


# ----------------------------------------------------------------------------
# Pallas kernel: one ResidualRNN (LayerNorm -> BiLSTM -> Linear -> residual)
# Block layout is time-major: (A, Sb, E)  (A = RNN axis, Sb = batch tile).
# ----------------------------------------------------------------------------
def residual_rnn_kernel(z_ref, gamma_ref, beta_ref,
                        wih_ref, bih_ref,
                        whhf_ref, whhr_ref,
                        wfc_ref, bfc_ref,
                        out_ref,
                        g_ref, h_ref):
    A, Sb, E = z_ref.shape
    H = whhf_ref.shape[0]
    G = 4 * H

    z0 = z_ref[...].astype(jnp.float32)

    # ---- LayerNorm over the embedding axis (biased variance, like torch) ----
    mean = jnp.mean(z0, axis=-1, keepdims=True)
    var = jnp.mean(jnp.square(z0 - mean), axis=-1, keepdims=True)
    xn = (z0 - mean) * jax.lax.rsqrt(var + LN_EPS)
    xn = xn * gamma_ref[...][None] + beta_ref[...][None]            # (A, Sb, E)

    # ---- ONE fused input projection for both directions: (A*Sb,E) x (E,8H) ----
    # bf16 MXU operands, f32 accumulation; result stored once into a single
    # bf16 scratch and sliced (128-aligned) inside the recurrence loop.
    gates = jnp.dot(xn.reshape(A * Sb, E).astype(jnp.bfloat16), wih_ref[...],
                    preferred_element_type=jnp.float32) + bih_ref[...]
    g_ref[...] = gates.reshape(A, Sb, 2 * G).astype(g_ref.dtype)

    whh_f = whhf_ref[...]
    whh_r = whhr_ref[...]

    # The cell-gate 2x pre-scale is folded into the weights at prep time, so
    # the gate nonlinearity is a single sigmoid over the full (Sb, 4H) tile,
    # followed by a cheap scale/shift recovering tanh on the cell quarter:
    #   tanh(x) = 2*sigmoid(2x) - 1.
    lane = jax.lax.broadcasted_iota(jnp.int32, (1, G), 1)
    cell_q = (lane >= 2 * H) & (lane < 3 * H)
    post_scale = jnp.where(cell_q, 2.0, 1.0).astype(jnp.float32)    # (1, 4H)
    post_shift = jnp.where(cell_q, 1.0, 0.0).astype(jnp.float32)    # (1, 4H)

    def lstm_cell(g, c):
        # PyTorch gate order: input, forget, cell(g), output.
        act = jax.nn.sigmoid(g) * post_scale - post_shift           # [i, f, tanh(g), o]
        i = act[:, 0 * H:1 * H]
        f = act[:, 1 * H:2 * H]
        cc = act[:, 2 * H:3 * H]
        o = act[:, 3 * H:4 * H]
        c_new = f * c + i * cc
        h_new = o * jnp.tanh(c_new)
        return h_new, c_new

    zeros = jnp.zeros((Sb, H), jnp.float32)

    # ---- fused + unrolled bidirectional recurrence ----
    # Forward handles time t, backward handles time A-1-t; the two independent
    # serial chains are interleaved so their latencies overlap.
    def step(t, carry):
        h_f, c_f, h_b, c_b = carry
        tb = A - 1 - t
        g_f = g_ref[t, :, :G] + jnp.dot(h_f.astype(jnp.bfloat16), whh_f,
                                        preferred_element_type=jnp.float32)
        g_b = g_ref[tb, :, G:] + jnp.dot(h_b.astype(jnp.bfloat16), whh_r,
                                         preferred_element_type=jnp.float32)
        h_f, c_f = lstm_cell(g_f, c_f)
        h_b, c_b = lstm_cell(g_b, c_b)
        h_ref[t, :, :H] = h_f.astype(h_ref.dtype)
        h_ref[tb, :, H:] = h_b.astype(h_ref.dtype)
        return h_f, c_f, h_b, c_b

    jax.lax.fori_loop(0, A, step, (zeros, zeros, zeros, zeros),
                      unroll=min(A, 8))

    # ---- output Linear (2H -> E) on the combined bf16 hidden scratch + residual ----
    h = h_ref[...].reshape(A * Sb, 2 * H)
    y = (jnp.dot(h, wfc_ref[...], preferred_element_type=jnp.float32)
         + bfc_ref[...]).reshape(A, Sb, E)
    out_ref[...] = (y + z0).astype(out_ref.dtype)


def _full_spec(arr):
    # TODO(synk): these weights are constant across the grid; pipeline_mode=
    # pl.Buffered(1) would reclaim their double-buffer VMEM (matters for H~256
    # under v7x's 64 MiB).  Left at the default for lowering safety.
    n = arr.ndim
    return pl.BlockSpec(arr.shape, lambda i, n=n: (0,) * n)


def _prep_layer_params(p):
    """Host-side prep: fuse the two directions' input projections into one
    (E, 8H) weight, fold the cell-gate 2x pre-scale into all weights/biases
    (so the kernel needs no pre-scale multiply in the recurrence loop), and
    cast matmul operands to bf16 (f32 accumulation stays in-kernel).
    b_f / b_r are torch's (b_ih + b_hh) pre-summed."""
    H = p['whh_f'].shape[0]

    def fold_cell(w):
        # scale the cell-gate (2H:3H) columns by 2: tanh(x) = 2*sigmoid(2x)-1
        return jnp.concatenate(
            [w[..., :2 * H], 2.0 * w[..., 2 * H:3 * H], w[..., 3 * H:]], axis=-1)

    wih = jnp.concatenate([fold_cell(p['wih_f']), fold_cell(p['wih_r'])],
                          axis=1).astype(jnp.bfloat16)
    bih = jnp.concatenate([fold_cell(p['b_f']), fold_cell(p['b_r'])],
                          axis=1).astype(jnp.float32)
    return (p['gamma'].astype(jnp.float32), p['beta'].astype(jnp.float32),
            wih, bih,
            fold_cell(p['whh_f']).astype(jnp.bfloat16),
            fold_cell(p['whh_r']).astype(jnp.bfloat16),
            p['wfc'].astype(jnp.bfloat16),
            p['bfc'].astype(jnp.float32))


def residual_rnn_pallas(zt, p, max_sb=256):
    """zt: (A, S, E) time-major (A = RNN axis, S = flattened batch)."""
    A, S, E = zt.shape
    H = p['whh_f'].shape[0]

    Sb = _choose_sb(S, A, E, H, max_sb=max_sb)
    S_pad = _round_up(S, Sb)
    if S_pad != S:
        zt = jnp.pad(zt, ((0, 0), (0, S_pad - S), (0, 0)))   # masked tail via zero-pad

    params = _prep_layer_params(p)

    out = pl.pallas_call(
        residual_rnn_kernel,
        out_shape=jax.ShapeDtypeStruct((A, S_pad, E), zt.dtype),
        grid=(S_pad // Sb,),
        in_specs=[pl.BlockSpec((A, Sb, E), lambda i: (0, i, 0))]
                 + [_full_spec(a) for a in params],
        out_specs=pl.BlockSpec((A, Sb, E), lambda i: (0, i, 0)),
        scratch_shapes=[
            pltpu.VMEM((A, Sb, 8 * H), jnp.bfloat16),   # fused fwd|bwd gate pre-activations
            pltpu.VMEM((A, Sb, 2 * H), jnp.bfloat16),   # fwd|bwd hidden states
        ],
        compiler_params=pltpu.CompilerParams(
            dimension_semantics=("parallel",),
            vmem_limit_bytes=_VMEM_LIMIT_BYTES),
    )(zt, *params)

    if S_pad != S:
        out = out[:, :S, :]
    return out


# ----------------------------------------------------------------------------
# SeqBandModellingModule forward (parallel_mode=False)
# ----------------------------------------------------------------------------
def seq_band_modelling_forward(z, layer_params, max_sb=256, io_dtype=None):
    """z: (batch, dim1, dim2, emb).  Keeps the activation time-major between
    layers so each layer costs one HBM transpose instead of three.
    io_dtype=jnp.bfloat16 halves inter-layer HBM traffic (biggest win on v5e);
    default None keeps the input dtype for bit-tighter accuracy.
    TODO(synk): torch wraps the stack in checkpoint_sequential (gradient
    remat); forward semantics are identical to plain sequential application.
    TODO(synk): fold the inter-layer transpose into out_specs (write blocks in
    the next layer's axis order) to remove the remaining per-layer round-trip."""
    in_dtype = z.dtype
    zt = jnp.transpose(z, (2, 0, 1, 3))            # (T0 = dim2, B, dim1, E)
    if io_dtype is not None:
        zt = zt.astype(io_dtype)
    n_layers = len(layer_params)
    for li, p in enumerate(layer_params):
        T, b, o, e = zt.shape
        z3 = residual_rnn_pallas(zt.reshape(T, b * o, e), p, max_sb=max_sb)
        zt = z3.reshape(T, b, o, e)
        if li < n_layers - 1:
            zt = jnp.transpose(zt, (2, 1, 0, 3))   # next layer's RNN axis to front
    return jnp.transpose(zt, (1, 0, 2, 3)).astype(in_dtype)   # == torch's trailing Transpose(1,2)


# ----------------------------------------------------------------------------
# Pure-JAX reference (f32 throughout) for correctness check
# ----------------------------------------------------------------------------
def _residual_rnn_ref(z3, p):
    S, A, E = z3.shape
    H = p['whh_f'].shape[0]
    x = z3
    mean = x.mean(-1, keepdims=True)
    var = ((x - mean) ** 2).mean(-1, keepdims=True)
    xn = (x - mean) / jnp.sqrt(var + LN_EPS) * p['gamma'][0] + p['beta'][0]

    def run(wih, whh, b, reverse):
        gi = jnp.einsum('sae,eg->sag', xn, wih) + b[0]
        gi = jnp.swapaxes(gi, 0, 1)                             # (A, S, 4H)
        if reverse:
            gi = gi[::-1]

        def step(carry, g_t):
            h, c = carry
            g = g_t + h @ whh
            i = jax.nn.sigmoid(g[:, :H])
            f = jax.nn.sigmoid(g[:, H:2 * H])
            cc = jnp.tanh(g[:, 2 * H:3 * H])
            o = jax.nn.sigmoid(g[:, 3 * H:])
            c = f * c + i * cc
            h = o * jnp.tanh(c)
            return (h, c), h

        init = (jnp.zeros((S, H), jnp.float32), jnp.zeros((S, H), jnp.float32))
        _, hs = jax.lax.scan(step, init, gi)
        if reverse:
            hs = hs[::-1]
        return jnp.swapaxes(hs, 0, 1)                           # (S, A, H)

    hf = run(p['wih_f'], p['whh_f'], p['b_f'], False)
    hb = run(p['wih_r'], p['whh_r'], p['b_r'], True)
    h = jnp.concatenate([hf, hb], axis=-1)
    out = jnp.einsum('sah,he->sae', h, p['wfc']) + p['bfc'][0]
    return out + z3


def seq_band_modelling_ref(z, layer_params):
    for p in layer_params:
        B, U, A, E = z.shape
        z3 = _residual_rnn_ref(z.reshape(B * U, A, E), p)
        z = jnp.swapaxes(z3.reshape(B, U, A, E), 1, 2)
    return z


# ----------------------------------------------------------------------------
# Deterministic parameter init (b_* == torch's b_ih + b_hh pre-summed)
# ----------------------------------------------------------------------------
def init_layer_params(key, emb_dim, rnn_dim):
    E, H = emb_dim, rnn_dim
    ks = jax.random.split(key, 8)
    s_ih = 1.0 / np.sqrt(E)
    s_hh = 1.0 / np.sqrt(H)
    s_fc = 1.0 / np.sqrt(2 * H)
    return {
        'gamma': jnp.ones((1, E), jnp.float32),
        'beta': jnp.zeros((1, E), jnp.float32),
        'wih_f': (jax.random.normal(ks[0], (E, 4 * H)) * s_ih).astype(jnp.float32),
        'whh_f': (jax.random.normal(ks[1], (H, 4 * H)) * s_hh).astype(jnp.float32),
        'b_f': (jax.random.normal(ks[2], (1, 4 * H)) * s_hh).astype(jnp.float32),
        'wih_r': (jax.random.normal(ks[3], (E, 4 * H)) * s_ih).astype(jnp.float32),
        'whh_r': (jax.random.normal(ks[4], (H, 4 * H)) * s_hh).astype(jnp.float32),
        'b_r': (jax.random.normal(ks[5], (1, 4 * H)) * s_hh).astype(jnp.float32),
        'wfc': (jax.random.normal(ks[6], (2 * H, E)) * s_fc).astype(jnp.float32),
        'bfc': (jax.random.normal(ks[7], (1, E)) * s_fc).astype(jnp.float32),
    }


if __name__ == "__main__":
    # Small shapes consistent with the module:
    #   batch=2, n_bands=4, n_time=8, emb_dim=32, rnn_dim=32, n_modules=2
    B, U, A, E, H = 2, 4, 8, 32, 32
    n_modules = 2                                 # -> 2 * n_modules = 4 ResidualRNN layers

    key = jax.random.PRNGKey(0)
    key, zkey = jax.random.split(key)
    z = jax.random.normal(zkey, (B, U, A, E), dtype=jnp.float32)

    layer_keys = jax.random.split(key, 2 * n_modules)
    layer_params = [init_layer_params(k, E, H) for k in layer_keys]

    out = jax.block_until_ready(seq_band_modelling_forward(z, layer_params))
    assert out.shape == (B, U, A, E), out.shape

    ref = jax.block_until_ready(seq_band_modelling_ref(z, layer_params))
    # bf16 MXU operands / bf16 gate+hidden scratch (f32 accumulation, f32 LSTM
    # state carries) vs the f32 reference: tolerance loosened accordingly.
    np.testing.assert_allclose(np.asarray(out), np.asarray(ref),
                               atol=5e-2, rtol=5e-2)
    print("KERNEL_OK")
</pallas_src>

<mosaic_0001>
module attributes {stable_mosaic.version = 11 : i64} {
  func.func @residual_rnn_kernel(%arg0: i32, %arg1: memref<8x8x32xf32, #tpu.memory_space<vmem>>, %arg2: memref<1x32xf32, #tpu.memory_space<vmem>>, %arg3: memref<1x32xf32, #tpu.memory_space<vmem>>, %arg4: memref<32x256xbf16, #tpu.memory_space<vmem>>, %arg5: memref<1x256xf32, #tpu.memory_space<vmem>>, %arg6: memref<32x128xbf16, #tpu.memory_space<vmem>>, %arg7: memref<32x128xbf16, #tpu.memory_space<vmem>>, %arg8: memref<64x32xbf16, #tpu.memory_space<vmem>>, %arg9: memref<1x32xf32, #tpu.memory_space<vmem>>, %arg10: memref<8x8x32xf32, #tpu.memory_space<vmem>>, %arg11: memref<8x8x256xbf16, #tpu.memory_space<vmem>>, %arg12: memref<8x8x64xbf16, #tpu.memory_space<vmem>>) attributes {dimension_semantics = [#tpu.dimension_semantics<parallel>], iteration_bounds = array<i64: 1>, scalar_prefetch = 0 : i64, scratch_operands = 2 : i64, tpu.core_type = #tpu.core_type<tc>, window_params = [{transform_indices = @transform_0, window_bounds = array<i64: 8, 8, 32>}, {pipeline_mode = #tpu.pipeline_mode<synchronous>, transform_indices = @transform_1, window_bounds = array<i64: 1, 32>}, {pipeline_mode = #tpu.pipeline_mode<synchronous>, transform_indices = @transform_2, window_bounds = array<i64: 1, 32>}, {pipeline_mode = #tpu.pipeline_mode<synchronous>, transform_indices = @transform_3, window_bounds = array<i64: 32, 256>}, {pipeline_mode = #tpu.pipeline_mode<synchronous>, transform_indices = @transform_4, window_bounds = array<i64: 1, 256>}, {pipeline_mode = #tpu.pipeline_mode<synchronous>, transform_indices = @transform_5, window_bounds = array<i64: 32, 128>}, {pipeline_mode = #tpu.pipeline_mode<synchronous>, transform_indices = @transform_6, window_bounds = array<i64: 32, 128>}, {pipeline_mode = #tpu.pipeline_mode<synchronous>, transform_indices = @transform_7, window_bounds = array<i64: 64, 32>}, {pipeline_mode = #tpu.pipeline_mode<synchronous>, transform_indices = @transform_8, window_bounds = array<i64: 1, 32>}, {transform_indices = @transform_9, window_bounds = array<i64: 8, 8, 32>}]} {
    %c0 = arith.constant 0 : index
    %c0_0 = arith.constant 0 : index
    %c0_1 = arith.constant 0 : index
    %0 = vector.load %arg1[%c0, %c0_0, %c0_1] : memref<8x8x32xf32, #tpu.memory_space<vmem>>, vector<8x8x32xf32>
    %cst = arith.constant dense<0.000000e+00> : vector<8x8xf32>
    %1 = vector.multi_reduction <add>, %0, %cst [2] : vector<8x8x32xf32> to vector<8x8xf32>
    %2 = vector.shape_cast %1 : vector<8x8xf32> to vector<8x8x1xf32>
    %cst_2 = arith.constant 3.200000e+01 : f32
    %3 = vector.broadcast %cst_2 : f32 to vector<8x8x1xf32>
    %4 = arith.divf %2, %3 : vector<8x8x1xf32>
    %5 = vector.broadcast %4 : vector<8x8x1xf32> to vector<8x8x32xf32>
    %6 = arith.subf %0, %5 : vector<8x8x32xf32>
    %7 = arith.mulf %6, %6 : vector<8x8x32xf32>
    %cst_3 = arith.constant dense<0.000000e+00> : vector<8x8xf32>
    %8 = vector.multi_reduction <add>, %7, %cst_3 [2] : vector<8x8x32xf32> to vector<8x8xf32>
    %9 = vector.shape_cast %8 : vector<8x8xf32> to vector<8x8x1xf32>
    %cst_4 = arith.constant 3.200000e+01 : f32
    %10 = vector.broadcast %cst_4 : f32 to vector<8x8x1xf32>
    %11 = arith.divf %9, %10 : vector<8x8x1xf32>
    %12 = vector.broadcast %4 : vector<8x8x1xf32> to vector<8x8x32xf32>
    %13 = arith.subf %0, %12 : vector<8x8x32xf32>
    %cst_5 = arith.constant 9.99999974E-6 : f32
    %14 = vector.broadcast %cst_5 : f32 to vector<8x8x1xf32>
    %15 = arith.addf %11, %14 : vector<8x8x1xf32>
    %16 = math.rsqrt %15 : vector<8x8x1xf32>
    %17 = vector.broadcast %16 : vector<8x8x1xf32> to vector<8x8x32xf32>
    %18 = arith.mulf %13, %17 : vector<8x8x32xf32>
    %c0_6 = arith.constant 0 : index
    %c0_7 = arith.constant 0 : index
    %19 = vector.load %arg2[%c0_6, %c0_7] : memref<1x32xf32, #tpu.memory_space<vmem>>, vector<1x32xf32>
    %20 = vector.shape_cast %19 : vector<1x32xf32> to vector<1x1x32xf32>
    %21 = vector.broadcast %20 : vector<1x1x32xf32> to vector<8x8x32xf32>
    %22 = arith.mulf %18, %21 : vector<8x8x32xf32>
    %c0_8 = arith.constant 0 : index
    %c0_9 = arith.constant 0 : index
    %23 = vector.load %arg3[%c0_8, %c0_9] : memref<1x32xf32, #tpu.memory_space<vmem>>, vector<1x32xf32>
    %24 = vector.shape_cast %23 : vector<1x32xf32> to vector<1x1x32xf32>
    %25 = vector.broadcast %24 : vector<1x1x32xf32> to vector<8x8x32xf32>
    %26 = arith.addf %22, %25 : vector<8x8x32xf32>
    %27 = vector.shape_cast %26 : vector<8x8x32xf32> to vector<64x32xf32>
    %28 = arith.truncf %27 : vector<64x32xf32> to vector<64x32xbf16>
    %c0_10 = arith.constant 0 : index
    %c0_11 = arith.constant 0 : index
    %29 = vector.load %arg4[%c0_10, %c0_11] : memref<32x256xbf16, #tpu.memory_space<vmem>>, vector<32x256xbf16>
    %cst_12 = arith.constant dense<0.000000e+00> : vector<64x256xf32>
    %30 = tpu.matmul %28, %29, %cst_12 {dimension_numbers = #tpu.dot_dimension_numbers<[1], [0], [0], [1], [0, 0, 1, 1], [], []>} : vector<64x32xbf16>, vector<32x256xbf16>, vector<64x256xf32> -> vector<64x256xf32>
    %c0_13 = arith.constant 0 : index
    %c0_14 = arith.constant 0 : index
    %31 = vector.load %arg5[%c0_13, %c0_14] : memref<1x256xf32, #tpu.memory_space<vmem>>, vector<1x256xf32>
    %32 = vector.broadcast %31 : vector<1x256xf32> to vector<64x256xf32>
    %33 = arith.addf %30, %32 : vector<64x256xf32>
    %34 = vector.shape_cast %33 : vector<64x256xf32> to vector<8x8x256xf32>
    %35 = arith.truncf %34 : vector<8x8x256xf32> to vector<8x8x256xbf16>
    %c0_15 = arith.constant 0 : index
    %c0_16 = arith.constant 0 : index
    %c0_17 = arith.constant 0 : index
    %36 = vector.load %arg11[%c0_15, %c0_16, %c0_17] : memref<8x8x256xbf16, #tpu.memory_space<vmem>>, vector<8x8x256xbf16>
    tpu.vector_store %arg11[%c0_15, %c0_16, %c0_17], %35 {strides = array<i32>} : memref<8x8x256xbf16, #tpu.memory_space<vmem>>, vector<8x8x256xbf16>,
    %c0_18 = arith.constant 0 : index
    %c0_19 = arith.constant 0 : index
    %37 = vector.load %arg6[%c0_18, %c0_19] : memref<32x128xbf16, #tpu.memory_space<vmem>>, vector<32x128xbf16>
    %c0_20 = arith.constant 0 : index
    %c0_21 = arith.constant 0 : index
    %38 = vector.load %arg7[%c0_20, %c0_21] : memref<32x128xbf16, #tpu.memory_space<vmem>>, vector<32x128xbf16>
    %39 = tpu.iota {dimensions = array<i32: 1>} : vector<1x128xi32>
    %c64_i32 = arith.constant 64 : i32
    %40 = vector.broadcast %c64_i32 : i32 to vector<1x128xi32>
    %41 = arith.cmpi sge, %39, %40 : vector<1x128xi32>
    %c96_i32 = arith.constant 96 : i32
    %42 = vector.broadcast %c96_i32 : i32 to vector<1x128xi32>
    %43 = arith.cmpi slt, %39, %42 : vector<1x128xi32>
    %44 = arith.andi %41, %43 : vector<1x128xi1>
    %cst_22 = arith.constant 2.000000e+00 : f32
    %cst_23 = arith.constant 1.000000e+00 : f32
    %45 = vector.broadcast %cst_22 : f32 to vector<1x128xf32>
    %46 = vector.broadcast %cst_23 : f32 to vector<1x128xf32>
    %47 = arith.select %44, %45, %46 : vector<1x128xi1>, vector<1x128xf32>
    %cst_24 = arith.constant 1.000000e+00 : f32
    %cst_25 = arith.constant 0.000000e+00 : f32
    %48 = vector.broadcast %cst_24 : f32 to vector<1x128xf32>
    %49 = vector.broadcast %cst_25 : f32 to vector<1x128xf32>
    %50 = arith.select %44, %48, %49 : vector<1x128xi1>, vector<1x128xf32>
    %cst_26 = arith.constant 0.000000e+00 : f32
    %51 = vector.broadcast %cst_26 : f32 to vector<8x32xf32>
    %c0_i32 = arith.constant 0 : i32
    %c7_i32 = arith.constant 7 : i32
    %52 = arith.subi %c7_i32, %c0_i32 : i32
    %53 = arith.index_cast %c0_i32 : i32 to index
    %c0_27 = arith.constant 0 : index
    %c0_28 = arith.constant 0 : index
    %54 = vector.load %arg11[%53, %c0_27, %c0_28] : memref<8x8x256xbf16, #tpu.memory_space<vmem>>, vector<1x8x128xbf16>
    %55 = vector.shape_cast %54 : vector<1x8x128xbf16> to vector<8x128xbf16>
    %56 = arith.truncf %51 : vector<8x32xf32> to vector<8x32xbf16>
    %cst_29 = arith.constant dense<0.000000e+00> : vector<8x128xf32>
    %57 = tpu.matmul %56, %37, %cst_29 {dimension_numbers = #tpu.dot_dimension_numbers<[1], [0], [0], [1], [0, 0, 1, 1], [], []>} : vector<8x32xbf16>, vector<32x128xbf16>, vector<8x128xf32> -> vector<8x128xf32>
    %58 = arith.extf %55 : vector<8x128xbf16> to vector<8x128xf32>
    %59 = arith.addf %58, %57 : vector<8x128xf32>
    %60 = arith.index_cast %52 : i32 to index
    %c0_30 = arith.constant 0 : index
    %c128 = arith.constant 128 : index
    %61 = vector.load %arg11[%60, %c0_30, %c128] : memref<8x8x256xbf16, #tpu.memory_space<vmem>>, vector<1x8x128xbf16>
    %62 = vector.shape_cast %61 : vector<1x8x128xbf16> to vector<8x128xbf16>
    %63 = arith.truncf %51 : vector<8x32xf32> to vector<8x32xbf16>
    %cst_31 = arith.constant dense<0.000000e+00> : vector<8x128xf32>
    %64 = tpu.matmul %63, %38, %cst_31 {dimension_numbers = #tpu.dot_dimension_numbers<[1], [0], [0], [1], [0, 0, 1, 1], [], []>} : vector<8x32xbf16>, vector<32x128xbf16>, vector<8x128xf32> -> vector<8x128xf32>
    %65 = arith.extf %62 : vector<8x128xbf16> to vector<8x128xf32>
    %66 = arith.addf %65, %64 : vector<8x128xf32>
    %67 = arith.negf %59 : vector<8x128xf32>
    %68 = math.exp %67 : vector<8x128xf32>
    %cst_32 = arith.constant 1.000000e+00 : f32
    %69 = vector.broadcast %cst_32 : f32 to vector<8x128xf32>
    %70 = arith.addf %69, %68 : vector<8x128xf32>
    %71 = arith.divf %69, %70 : vector<8x128xf32>
    %72 = vector.broadcast %47 : vector<1x128xf32> to vector<8x128xf32>
    %73 = arith.mulf %71, %72 : vector<8x128xf32>
    %74 = vector.broadcast %50 : vector<1x128xf32> to vector<8x128xf32>
    %75 = arith.subf %73, %74 : vector<8x128xf32>
    %76 = vector.extract_strided_slice %75 {offsets = [0, 0], sizes = [8, 32], strides = [1, 1]} : vector<8x128xf32> to vector<8x32xf32>
    %77 = vector.extract_strided_slice %75 {offsets = [0, 32], sizes = [8, 32], strides = [1, 1]} : vector<8x128xf32> to vector<8x32xf32>
    %78 = vector.extract_strided_slice %75 {offsets = [0, 64], sizes = [8, 32], strides = [1, 1]} : vector<8x128xf32> to vector<8x32xf32>
    %79 = vector.extract_strided_slice %75 {offsets = [0, 96], sizes = [8, 32], strides = [1, 1]} : vector<8x128xf32> to vector<8x32xf32>
    %80 = arith.mulf %77, %51 : vector<8x32xf32>
    %81 = arith.mulf %76, %78 : vector<8x32xf32>
    %82 = arith.addf %80, %81 : vector<8x32xf32>
    %83 = math.tanh %82 : vector<8x32xf32>
    %84 = arith.mulf %79, %83 : vector<8x32xf32>
    %85 = arith.negf %66 : vector<8x128xf32>
    %86 = math.exp %85 : vector<8x128xf32>
    %cst_33 = arith.constant 1.000000e+00 : f32
    %87 = vector.broadcast %cst_33 : f32 to vector<8x128xf32>
    %88 = arith.addf %87, %86 : vector<8x128xf32>
    %89 = arith.divf %87, %88 : vector<8x128xf32>
    %90 = vector.broadcast %47 : vector<1x128xf32> to vector<8x128xf32>
    %91 = arith.mulf %89, %90 : vector<8x128xf32>
    %92 = vector.broadcast %50 : vector<1x128xf32> to vector<8x128xf32>
    %93 = arith.subf %91, %92 : vector<8x128xf32>
    %94 = vector.extract_strided_slice %93 {offsets = [0, 0], sizes = [8, 32], strides = [1, 1]} : vector<8x128xf32> to vector<8x32xf32>
    %95 = vector.extract_strided_slice %93 {offsets = [0, 32], sizes = [8, 32], strides = [1, 1]} : vector<8x128xf32> to vector<8x32xf32>
    %96 = vector.extract_strided_slice %93 {offsets = [0, 64], sizes = [8, 32], strides = [1, 1]} : vector<8x128xf32> to vector<8x32xf32>
    %97 = vector.extract_strided_slice %93 {offsets = [0, 96], sizes = [8, 32], strides = [1, 1]} : vector<8x128xf32> to vector<8x32xf32>
    %98 = arith.mulf %95, %51 : vector<8x32xf32>
    %99 = arith.mulf %94, %96 : vector<8x32xf32>
    %100 = arith.addf %98, %99 : vector<8x32xf32>
    %101 = math.tanh %100 : vector<8x32xf32>
    %102 = arith.mulf %97, %101 : vector<8x32xf32>
    %103 = arith.truncf %84 : vector<8x32xf32> to vector<8x32xbf16>
    %104 = arith.index_cast %c0_i32 : i32 to index
    %c0_34 = arith.constant 0 : index
    %c0_35 = arith.constant 0 : index
    %105 = vector.load %arg12[%104, %c0_34, %c0_35] : memref<8x8x64xbf16, #tpu.memory_space<vmem>>, vector<1x8x32xbf16>
    %106 = vector.shape_cast %105 : vector<1x8x32xbf16> to vector<8x32xbf16>
    %107 = vector.shape_cast %103 : vector<8x32xbf16> to vector<1x8x32xbf16>
    tpu.vector_store %arg12[%104, %c0_34, %c0_35], %107 {strides = array<i32>} : memref<8x8x64xbf16, #tpu.memory_space<vmem>>, vector<1x8x32xbf16>,
    %108 = arith.truncf %102 : vector<8x32xf32> to vector<8x32xbf16>
    %109 = arith.index_cast %52 : i32 to index
    %c0_36 = arith.constant 0 : index
    %c32 = arith.constant 32 : index
    %110 = vector.load %arg12[%109, %c0_36, %c32] : memref<8x8x64xbf16, #tpu.memory_space<vmem>>, vector<1x8x32xbf16>
    %111 = vector.shape_cast %110 : vector<1x8x32xbf16> to vector<8x32xbf16>
    %112 = vector.shape_cast %108 : vector<8x32xbf16> to vector<1x8x32xbf16>
    tpu.vector_store %arg12[%109, %c0_36, %c32], %112 {strides = array<i32>} : memref<8x8x64xbf16, #tpu.memory_space<vmem>>, vector<1x8x32xbf16>,
    %c1_i32 = arith.constant 1 : i32
    %c7_i32_37 = arith.constant 7 : i32
    %113 = arith.subi %c7_i32_37, %c1_i32 : i32
    %114 = arith.index_cast %c1_i32 : i32 to index
    %c0_38 = arith.constant 0 : index
    %c0_39 = arith.constant 0 : index
    %115 = vector.load %arg11[%114, %c0_38, %c0_39] : memref<8x8x256xbf16, #tpu.memory_space<vmem>>, vector<1x8x128xbf16>
    %116 = vector.shape_cast %115 : vector<1x8x128xbf16> to vector<8x128xbf16>
    %117 = arith.truncf %84 : vector<8x32xf32> to vector<8x32xbf16>
    %cst_40 = arith.constant dense<0.000000e+00> : vector<8x128xf32>
    %118 = tpu.matmul %117, %37, %cst_40 {dimension_numbers = #tpu.dot_dimension_numbers<[1], [0], [0], [1], [0, 0, 1, 1], [], []>} : vector<8x32xbf16>, vector<32x128xbf16>, vector<8x128xf32> -> vector<8x128xf32>
    %119 = arith.extf %116 : vector<8x128xbf16> to vector<8x128xf32>
    %120 = arith.addf %119, %118 : vector<8x128xf32>
    %121 = arith.index_cast %113 : i32 to index
    %c0_41 = arith.constant 0 : index
    %c128_42 = arith.constant 128 : index
    %122 = vector.load %arg11[%121, %c0_41, %c128_42] : memref<8x8x256xbf16, #tpu.memory_space<vmem>>, vector<1x8x128xbf16>
    %123 = vector.shape_cast %122 : vector<1x8x128xbf16> to vector<8x128xbf16>
    %124 = arith.truncf %102 : vector<8x32xf32> to vector<8x32xbf16>
    %cst_43 = arith.constant dense<0.000000e+00> : vector<8x128xf32>
    %125 = tpu.matmul %124, %38, %cst_43 {dimension_numbers = #tpu.dot_dimension_numbers<[1], [0], [0], [1], [0, 0, 1, 1], [], []>} : vector<8x32xbf16>, vector<32x128xbf16>, vector<8x128xf32> -> vector<8x128xf32>
    %126 = arith.extf %123 : vector<8x128xbf16> to vector<8x128xf32>
    %127 = arith.addf %126, %125 : vector<8x128xf32>
    %128 = arith.negf %120 : vector<8x128xf32>
    %129 = math.exp %128 : vector<8x128xf32>
    %cst_44 = arith.constant 1.000000e+00 : f32
    %130 = vector.broadcast %cst_44 : f32 to vector<8x128xf32>
    %131 = arith.addf %130, %129 : vector<8x128xf32>
    %132 = arith.divf %130, %131 : vector<8x128xf32>
    %133 = vector.broadcast %47 : vector<1x128xf32> to vector<8x128xf32>
    %134 = arith.mulf %132, %133 : vector<8x128xf32>
    %135 = vector.broadcast %50 : vector<1x128xf32> to vector<8x128xf32>
    %136 = arith.subf %134, %135 : vector<8x128xf32>
    %137 = vector.extract_strided_slice %136 {offsets = [0, 0], sizes = [8, 32], strides = [1, 1]} : vector<8x128xf32> to vector<8x32xf32>
    %138 = vector.extract_strided_slice %136 {offsets = [0, 32], sizes = [8, 32], strides = [1, 1]} : vector<8x128xf32> to vector<8x32xf32>
    %139 = vector.extract_strided_slice %136 {offsets = [0, 64], sizes = [8, 32], strides = [1, 1]} : vector<8x128xf32> to vector<8x32xf32>
    %140 = vector.extract_strided_slice %136 {offsets = [0, 96], sizes = [8, 32], strides = [1, 1]} : vector<8x128xf32> to vector<8x32xf32>
    %141 = arith.mulf %138, %82 : vector<8x32xf32>
    %142 = arith.mulf %137, %139 : vector<8x32xf32>
    %143 = arith.addf %141, %142 : vector<8x32xf32>
    %144 = math.tanh %143 : vector<8x32xf32>
    %145 = arith.mulf %140, %144 : vector<8x32xf32>
    %146 = arith.negf %127 : vector<8x128xf32>
    %147 = math.exp %146 : vector<8x128xf32>
    %cst_45 = arith.constant 1.000000e+00 : f32
    %148 = vector.broadcast %cst_45 : f32 to vector<8x128xf32>
    %149 = arith.addf %148, %147 : vector<8x128xf32>
    %150 = arith.divf %148, %149 : vector<8x128xf32>
    %151 = vector.broadcast %47 : vector<1x128xf32> to vector<8x128xf32>
    %152 = arith.mulf %150, %151 : vector<8x128xf32>
    %153 = vector.broadcast %50 : vector<1x128xf32> to vector<8x128xf32>
    %154 = arith.subf %152, %153 : vector<8x128xf32>
    %155 = vector.extract_strided_slice %154 {offsets = [0, 0], sizes = [8, 32], strides = [1, 1]} : vector<8x128xf32> to vector<8x32xf32>
    %156 = vector.extract_strided_slice %154 {offsets = [0, 32], sizes = [8, 32], strides = [1, 1]} : vector<8x128xf32> to vector<8x32xf32>
    %157 = vector.extract_strided_slice %154 {offsets = [0, 64], sizes = [8, 32], strides = [1, 1]} : vector<8x128xf32> to vector<8x32xf32>
    %158 = vector.extract_strided_slice %154 {offsets = [0, 96], sizes = [8, 32], strides = [1, 1]} : vector<8x128xf32> to vector<8x32xf32>
    %159 = arith.mulf %156, %100 : vector<8x32xf32>
    %160 = arith.mulf %155, %157 : vector<8x32xf32>
    %161 = arith.addf %159, %160 : vector<8x32xf32>
    %162 = math.tanh %161 : vector<8x32xf32>
    %163 = arith.mulf %158, %162 : vector<8x32xf32>
    %164 = arith.truncf %145 : vector<8x32xf32> to vector<8x32xbf16>
    %165 = arith.index_cast %c1_i32 : i32 to index
    %c0_46 = arith.constant 0 : index
    %c0_47 = arith.constant 0 : index
    %166 = vector.load %arg12[%165, %c0_46, %c0_47] : memref<8x8x64xbf16, #tpu.memory_space<vmem>>, vector<1x8x32xbf16>
    %167 = vector.shape_cast %166 : vector<1x8x32xbf16> to vector<8x32xbf16>
    %168 = vector.shape_cast %164 : vector<8x32xbf16> to vector<1x8x32xbf16>
    tpu.vector_store %arg12[%165, %c0_46, %c0_47], %168 {strides = array<i32>} : memref<8x8x64xbf16, #tpu.memory_space<vmem>>, vector<1x8x32xbf16>,
    %169 = arith.truncf %163 : vector<8x32xf32> to vector<8x32xbf16>
    %170 = arith.index_cast %113 : i32 to index
    %c0_48 = arith.constant 0 : index
    %c32_49 = arith.constant 32 : index
    %171 = vector.load %arg12[%170, %c0_48, %c32_49] : memref<8x8x64xbf16, #tpu.memory_space<vmem>>, vector<1x8x32xbf16>
    %172 = vector.shape_cast %171 : vector<1x8x32xbf16> to vector<8x32xbf16>
    %173 = vector.shape_cast %169 : vector<8x32xbf16> to vector<1x8x32xbf16>
    tpu.vector_store %arg12[%170, %c0_48, %c32_49], %173 {strides = array<i32>} : memref<8x8x64xbf16, #tpu.memory_space<vmem>>, vector<1x8x32xbf16>,
    %c2_i32 = arith.constant 2 : i32
    %c7_i32_50 = arith.constant 7 : i32
    %174 = arith.subi %c7_i32_50, %c2_i32 : i32
    %175 = arith.index_cast %c2_i32 : i32 to index
    %c0_51 = arith.constant 0 : index
    %c0_52 = arith.constant 0 : index
    %176 = vector.load %arg11[%175, %c0_51, %c0_52] : memref<8x8x256xbf16, #tpu.memory_space<vmem>>, vector<1x8x128xbf16>
    %177 = vector.shape_cast %176 : vector<1x8x128xbf16> to vector<8x128xbf16>
    %178 = arith.truncf %145 : vector<8x32xf32> to vector<8x32xbf16>
    %cst_53 = arith.constant dense<0.000000e+00> : vector<8x128xf32>
    %179 = tpu.matmul %178, %37, %cst_53 {dimension_numbers = #tpu.dot_dimension_numbers<[1], [0], [0], [1], [0, 0, 1, 1], [], []>} : vector<8x32xbf16>, vector<32x128xbf16>, vector<8x128xf32> -> vector<8x128xf32>
    %180 = arith.extf %177 : vector<8x128xbf16> to vector<8x128xf32>
    %181 = arith.addf %180, %179 : vector<8x128xf32>
    %182 = arith.index_cast %174 : i32 to index
    %c0_54 = arith.constant 0 : index
    %c128_55 = arith.constant 128 : index
    %183 = vector.load %arg11[%182, %c0_54, %c128_55] : memref<8x8x256xbf16, #tpu.memory_space<vmem>>, vector<1x8x128xbf16>
    %184 = vector.shape_cast %183 : vector<1x8x128xbf16> to vector<8x128xbf16>
    %185 = arith.truncf %163 : vector<8x32xf32> to vector<8x32xbf16>
    %cst_56 = arith.constant dense<0.000000e+00> : vector<8x128xf32>
    %186 = tpu.matmul %185, %38, %cst_56 {dimension_numbers = #tpu.dot_dimension_numbers<[1], [0], [0], [1], [0, 0, 1, 1], [], []>} : vector<8x32xbf16>, vector<32x128xbf16>, vector<8x128xf32> -> vector<8x128xf32>
    %187 = arith.extf %184 : vector<8x128xbf16> to vector<8x128xf32>
    %188 = arith.addf %187, %186 : vector<8x128xf32>
    %189 = arith.negf %181 : vector<8x128xf32>
    %190 = math.exp %189 : vector<8x128xf32>
    %cst_57 = arith.constant 1.000000e+00 : f32
    %191 = vector.broadcast %cst_57 : f32 to vector<8x128xf32>
    %192 = arith.addf %191, %190 : vector<8x128xf32>
    %193 = arith.divf %191, %192 : vector<8x128xf32>
    %194 = vector.broadcast %47 : vector<1x128xf32> to vector<8x128xf32>
    %195 = arith.mulf %193, %194 : vector<8x128xf32>
    %196 = vector.broadcast %50 : vector<1x128xf32> to vector<8x128xf32>
    %197 = arith.subf %195, %196 : vector<8x128xf32>
    %198 = vector.extract_strided_slice %197 {offsets = [0, 0], sizes = [8, 32], strides = [1, 1]} : vector<8x128xf32> to vector<8x32xf32>
    %199 = vector.extract_strided_slice %197 {offsets = [0, 32], sizes = [8, 32], strides = [1, 1]} : vector<8x128xf32> to vector<8x32xf32>
    %200 = vector.extract_strided_slice %197 {offsets = [0, 64], sizes = [8, 32], strides = [1, 1]} : vector<8x128xf32> to vector<8x32xf32>
    %201 = vector.extract_strided_slice %197 {offsets = [0, 96], sizes = [8, 32], strides = [1, 1]} : vector<8x128xf32> to vector<8x32xf32>
    %202 = arith.mulf %199, %143 : vector<8x32xf32>
    %203 = arith.mulf %198, %200 : vector<8x32xf32>
    %204 = arith.addf %202, %203 : vector<8x32xf32>
    %205 = math.tanh %204 : vector<8x32xf32>
    %206 = arith.mulf %201, %205 : vector<8x32xf32>
    %207 = arith.negf %188 : vector<8x128xf32>
    %208 = math.exp %207 : vector<8x128xf32>
    %cst_58 = arith.constant 1.000000e+00 : f32
    %209 = vector.broadcast %cst_58 : f32 to vector<8x128xf32>
    %210 = arith.addf %209, %208 : vector<8x128xf32>
    %211 = arith.divf %209, %210 : vector<8x128xf32>
    %212 = vector.broadcast %47 : vector<1x128xf32> to vector<8x128xf32>
    %213 = arith.mulf %211, %212 : vector<8x128xf32>
    %214 = vector.broadcast %50 : vector<1x128xf32> to vector<8x128xf32>
    %215 = arith.subf %213, %214 : vector<8x128xf32>
    %216 = vector.extract_strided_slice %215 {offsets = [0, 0], sizes = [8, 32], strides = [1, 1]} : vector<8x128xf32> to vector<8x32xf32>
    %217 = vector.extract_strided_slice %215 {offsets = [0, 32], sizes = [8, 32], strides = [1, 1]} : vector<8x128xf32> to vector<8x32xf32>
    %218 = vector.extract_strided_slice %215 {offsets = [0, 64], sizes = [8, 32], strides = [1, 1]} : vector<8x128xf32> to vector<8x32xf32>
    %219 = vector.extract_strided_slice %215 {offsets = [0, 96], sizes = [8, 32], strides = [1, 1]} : vector<8x128xf32> to vector<8x32xf32>
    %220 = arith.mulf %217, %161 : vector<8x32xf32>
    %221 = arith.mulf %216, %218 : vector<8x32xf32>
    %222 = arith.addf %220, %221 : vector<8x32xf32>
    %223 = math.tanh %222 : vector<8x32xf32>
    %224 = arith.mulf %219, %223 : vector<8x32xf32>
    %225 = arith.truncf %206 : vector<8x32xf32> to vector<8x32xbf16>
    %226 = arith.index_cast %c2_i32 : i32 to index
    %c0_59 = arith.constant 0 : index
    %c0_60 = arith.constant 0 : index
    %227 = vector.load %arg12[%226, %c0_59, %c0_60] : memref<8x8x64xbf16, #tpu.memory_space<vmem>>, vector<1x8x32xbf16>
    %228 = vector.shape_cast %227 : vector<1x8x32xbf16> to vector<8x32xbf16>
    %229 = vector.shape_cast %225 : vector<8x32xbf16> to vector<1x8x32xbf16>
    tpu.vector_store %arg12[%226, %c0_59, %c0_60], %229 {strides = array<i32>} : memref<8x8x64xbf16, #tpu.memory_space<vmem>>, vector<1x8x32xbf16>,
    %230 = arith.truncf %224 : vector<8x32xf32> to vector<8x32xbf16>
    %231 = arith.index_cast %174 : i32 to index
    %c0_61 = arith.constant 0 : index
    %c32_62 = arith.constant 32 : index
    %232 = vector.load %arg12[%231, %c0_61, %c32_62] : memref<8x8x64xbf16, #tpu.memory_space<vmem>>, vector<1x8x32xbf16>
    %233 = vector.shape_cast %232 : vector<1x8x32xbf16> to vector<8x32xbf16>
    %234 = vector.shape_cast %230 : vector<8x32xbf16> to vector<1x8x32xbf16>
    tpu.vector_store %arg12[%231, %c0_61, %c32_62], %234 {strides = array<i32>} : memref<8x8x64xbf16, #tpu.memory_space<vmem>>, vector<1x8x32xbf16>,
    %c3_i32 = arith.constant 3 : i32
    %c7_i32_63 = arith.constant 7 : i32
    %235 = arith.subi %c7_i32_63, %c3_i32 : i32
    %236 = arith.index_cast %c3_i32 : i32 to index
    %c0_64 = arith.constant 0 : index
    %c0_65 = arith.constant 0 : index
    %237 = vector.load %arg11[%236, %c0_64, %c0_65] : memref<8x8x256xbf16, #tpu.memory_space<vmem>>, vector<1x8x128xbf16>
    %238 = vector.shape_cast %237 : vector<1x8x128xbf16> to vector<8x128xbf16>
    %239 = arith.truncf %206 : vector<8x32xf32> to vector<8x32xbf16>
    %cst_66 = arith.constant dense<0.000000e+00> : vector<8x128xf32>
    %240 = tpu.matmul %239, %37, %cst_66 {dimension_numbers = #tpu.dot_dimension_numbers<[1], [0], [0], [1], [0, 0, 1, 1], [], []>} : vector<8x32xbf16>, vector<32x128xbf16>, vector<8x128xf32> -> vector<8x128xf32>
    %241 = arith.extf %238 : vector<8x128xbf16> to vector<8x128xf32>
    %242 = arith.addf %241, %240 : vector<8x128xf32>
    %243 = arith.index_cast %235 : i32 to index
    %c0_67 = arith.constant 0 : index
    %c128_68 = arith.constant 128 : index
    %244 = vector.load %arg11[%243, %c0_67, %c128_68] : memref<8x8x256xbf16, #tpu.memory_space<vmem>>, vector<1x8x128xbf16>
    %245 = vector.shape_cast %244 : vector<1x8x128xbf16> to vector<8x128xbf16>
    %246 = arith.truncf %224 : vector<8x32xf32> to vector<8x32xbf16>
    %cst_69 = arith.constant dense<0.000000e+00> : vector<8x128xf32>
    %247 = tpu.matmul %246, %38, %cst_69 {dimension_numbers = #tpu.dot_dimension_numbers<[1], [0], [0], [1], [0, 0, 1, 1], [], []>} : vector<8x32xbf16>, vector<32x128xbf16>, vector<8x128xf32> -> vector<8x128xf32>
    %248 = arith.extf %245 : vector<8x128xbf16> to vector<8x128xf32>
    %249 = arith.addf %248, %247 : vector<8x128xf32>
    %250 = arith.negf %242 : vector<8x128xf32>
    %251 = math.exp %250 : vector<8x128xf32>
    %cst_70 = arith.constant 1.000000e+00 : f32
    %252 = vector.broadcast %cst_70 : f32 to vector<8x128xf32>
    %253 = arith.addf %252, %251 : vector<8x128xf32>
    %254 = arith.divf %252, %253 : vector<8x128xf32>
    %255 = vector.broadcast %47 : vector<1x128xf32> to vector<8x128xf32>
    %256 = arith.mulf %254, %255 : vector<8x128xf32>
    %257 = vector.broadcast %50 : vector<1x128xf32> to vector<8x128xf32>
    %258 = arith.subf %256, %257 : vector<8x128xf32>
    %259 = vector.extract_strided_slice %258 {offsets = [0, 0], sizes = [8, 32], strides = [1, 1]} : vector<8x128xf32> to vector<8x32xf32>
    %260 = vector.extract_strided_slice %258 {offsets = [0, 32], sizes = [8, 32], strides = [1, 1]} : vector<8x128xf32> to vector<8x32xf32>
    %261 = vector.extract_strided_slice %258 {offsets = [0, 64], sizes = [8, 32], strides = [1, 1]} : vector<8x128xf32> to vector<8x32xf32>
    %262 = vector.extract_strided_slice %258 {offsets = [0, 96], sizes = [8, 32], strides = [1, 1]} : vector<8x128xf32> to vector<8x32xf32>
    %263 = arith.mulf %260, %204 : vector<8x32xf32>
    %264 = arith.mulf %259, %261 : vector<8x32xf32>
    %265 = arith.addf %263, %264 : vector<8x32xf32>
    %266 = math.tanh %265 : vector<8x32xf32>
    %267 = arith.mulf %262, %266 : vector<8x32xf32>
    %268 = arith.negf %249 : vector<8x128xf32>
    %269 = math.exp %268 : vector<8x128xf32>
    %cst_71 = arith.constant 1.000000e+00 : f32
    %270 = vector.broadcast %cst_71 : f32 to vector<8x128xf32>
    %271 = arith.addf %270, %269 : vector<8x128xf32>
    %272 = arith.divf %270, %271 : vector<8x128xf32>
    %273 = vector.broadcast %47 : vector<1x128xf32> to vector<8x128xf32>
    %274 = arith.mulf %272, %273 : vector<8x128xf32>
    %275 = vector.broadcast %50 : vector<1x128xf32> to vector<8x128xf32>
    %276 = arith.subf %274, %275 : vector<8x128xf32>
    %277 = vector.extract_strided_slice %276 {offsets = [0, 0], sizes = [8, 32], strides = [1, 1]} : vector<8x128xf32> to vector<8x32xf32>
    %278 = vector.extract_strided_slice %276 {offsets = [0, 32], sizes = [8, 32], strides = [1, 1]} : vector<8x128xf32> to vector<8x32xf32>
    %279 = vector.extract_strided_slice %276 {offsets = [0, 64], sizes = [8, 32], strides = [1, 1]} : vector<8x128xf32> to vector<8x32xf32>
    %280 = vector.extract_strided_slice %276 {offsets = [0, 96], sizes = [8, 32], strides = [1, 1]} : vector<8x128xf32> to vector<8x32xf32>
    %281 = arith.mulf %278, %222 : vector<8x32xf32>
    %282 = arith.mulf %277, %279 : vector<8x32xf32>
    %283 = arith.addf %281, %282 : vector<8x32xf32>
    %284 = math.tanh %283 : vector<8x32xf32>
    %285 = arith.mulf %280, %284 : vector<8x32xf32>
    %286 = arith.truncf %267 : vector<8x32xf32> to vector<8x32xbf16>
    %287 = arith.index_cast %c3_i32 : i32 to index
    %c0_72 = arith.constant 0 : index
    %c0_73 = arith.constant 0 : index
    %288 = vector.load %arg12[%287, %c0_72, %c0_73] : memref<8x8x64xbf16, #tpu.memory_space<vmem>>, vector<1x8x32xbf16>
    %289 = vector.shape_cast %288 : vector<1x8x32xbf16> to vector<8x32xbf16>
    %290 = vector.shape_cast %286 : vector<8x32xbf16> to vector<1x8x32xbf16>
    tpu.vector_store %arg12[%287, %c0_72, %c0_73], %290 {strides = array<i32>} : memref<8x8x64xbf16, #tpu.memory_space<vmem>>, vector<1x8x32xbf16>,
    %291 = arith.truncf %285 : vector<8x32xf32> to vector<8x32xbf16>
    %292 = arith.index_cast %235 : i32 to index
    %c0_74 = arith.constant 0 : index
    %c32_75 = arith.constant 32 : index
    %293 = vector.load %arg12[%292, %c0_74, %c32_75] : memref<8x8x64xbf16, #tpu.memory_space<vmem>>, vector<1x8x32xbf16>
    %294 = vector.shape_cast %293 : vector<1x8x32xbf16> to vector<8x32xbf16>
    %295 = vector.shape_cast %291 : vector<8x32xbf16> to vector<1x8x32xbf16>
    tpu.vector_store %arg12[%292, %c0_74, %c32_75], %295 {strides = array<i32>} : memref<8x8x64xbf16, #tpu.memory_space<vmem>>, vector<1x8x32xbf16>,
    %c4_i32 = arith.constant 4 : i32
    %c7_i32_76 = arith.constant 7 : i32
    %296 = arith.subi %c7_i32_76, %c4_i32 : i32
    %297 = arith.index_cast %c4_i32 : i32 to index
    %c0_77 = arith.constant 0 : index
    %c0_78 = arith.constant 0 : index
    %298 = vector.load %arg11[%297, %c0_77, %c0_78] : memref<8x8x256xbf16, #tpu.memory_space<vmem>>, vector<1x8x128xbf16>
    %299 = vector.shape_cast %298 : vector<1x8x128xbf16> to vector<8x128xbf16>
    %300 = arith.truncf %267 : vector<8x32xf32> to vector<8x32xbf16>
    %cst_79 = arith.constant dense<0.000000e+00> : vector<8x128xf32>
    %301 = tpu.matmul %300, %37, %cst_79 {dimension_numbers = #tpu.dot_dimension_numbers<[1], [0], [0], [1], [0, 0, 1, 1], [], []>} : vector<8x32xbf16>, vector<32x128xbf16>, vector<8x128xf32> -> vector<8x128xf32>
    %302 = arith.extf %299 : vector<8x128xbf16> to vector<8x128xf32>
    %303 = arith.addf %302, %301 : vector<8x128xf32>
    %304 = arith.index_cast %296 : i32 to index
    %c0_80 = arith.constant 0 : index
    %c128_81 = arith.constant 128 : index
    %305 = vector.load %arg11[%304, %c0_80, %c128_81] : memref<8x8x256xbf16, #tpu.memory_space<vmem>>, vector<1x8x128xbf16>
    %306 = vector.shape_cast %305 : vector<1x8x128xbf16> to vector<8x128xbf16>
    %307 = arith.truncf %285 : vector<8x32xf32> to vector<8x32xbf16>
    %cst_82 = arith.constant dense<0.000000e+00> : vector<8x128xf32>
    %308 = tpu.matmul %307, %38, %cst_82 {dimension_numbers = #tpu.dot_dimension_numbers<[1], [0], [0], [1], [0, 0, 1, 1], [], []>} : vector<8x32xbf16>, vector<32x128xbf16>, vector<8x128xf32> -> vector<8x128xf32>
    %309 = arith.extf %306 : vector<8x128xbf16> to vector<8x128xf32>
    %310 = arith.addf %309, %308 : vector<8x128xf32>
    %311 = arith.negf %303 : vector<8x128xf32>
    %312 = math.exp %311 : vector<8x128xf32>
    %cst_83 = arith.constant 1.000000e+00 : f32
    %313 = vector.broadcast %cst_83 : f32 to vector<8x128xf32>
    %314 = arith.addf %313, %312 : vector<8x128xf32>
    %315 = arith.divf %313, %314 : vector<8x128xf32>
    %316 = vector.broadcast %47 : vector<1x128xf32> to vector<8x128xf32>
    %317 = arith.mulf %315, %316 : vector<8x128xf32>
    %318 = vector.broadcast %50 : vector<1x128xf32> to vector<8x128xf32>
    %319 = arith.subf %317, %318 : vector<8x128xf32>
    %320 = vector.extract_strided_slice %319 {offsets = [0, 0], sizes = [8, 32], strides = [1, 1]} : vector<8x128xf32> to vector<8x32xf32>
    %321 = vector.extract_strided_slice %319 {offsets = [0, 32], sizes = [8, 32], strides = [1, 1]} : vector<8x128xf32> to vector<8x32xf32>
    %322 = vector.extract_strided_slice %319 {offsets = [0, 64], sizes = [8, 32], strides = [1, 1]} : vector<8x128xf32> to vector<8x32xf32>
    %323 = vector.extract_strided_slice %319 {offsets = [0, 96], sizes = [8, 32], strides = [1, 1]} : vector<8x128xf32> to vector<8x32xf32>
    %324 = arith.mulf %321, %265 : vector<8x32xf32>
    %325 = arith.mulf %320, %322 : vector<8x32xf32>
    %326 = arith.addf %324, %325 : vector<8x32xf32>
    %327 = math.tanh %326 : vector<8x32xf32>
    %328 = arith.mulf %323, %327 : vector<8x32xf32>
    %329 = arith.negf %310 : vector<8x128xf32>
    %330 = math.exp %329 : vector<8x128xf32>
    %cst_84 = arith.constant 1.000000e+00 : f32
    %331 = vector.broadcast %cst_84 : f32 to vector<8x128xf32>
    %332 = arith.addf %331, %330 : vector<8x128xf32>
    %333 = arith.divf %331, %332 : vector<8x128xf32>
    %334 = vector.broadcast %47 : vector<1x128xf32> to vector<8x128xf32>
    %335 = arith.mulf %333, %334 : vector<8x128xf32>
    %336 = vector.broadcast %50 : vector<1x128xf32> to vector<8x128xf32>
    %337 = arith.subf %335, %336 : vector<8x128xf32>
    %338 = vector.extract_strided_slice %337 {offsets = [0, 0], sizes = [8, 32], strides = [1, 1]} : vector<8x128xf32> to vector<8x32xf32>
    %339 = vector.extract_strided_slice %337 {offsets = [0, 32], sizes = [8, 32], strides = [1, 1]} : vector<8x128xf32> to vector<8x32xf32>
    %340 = vector.extract_strided_slice %337 {offsets = [0, 64], sizes = [8, 32], strides = [1, 1]} : vector<8x128xf32> to vector<8x32xf32>
    %341 = vector.extract_strided_slice %337 {offsets = [0, 96], sizes = [8, 32], strides = [1, 1]} : vector<8x128xf32> to vector<8x32xf32>
    %342 = arith.mulf %339, %283 : vector<8x32xf32>
    %343 = arith.mulf %338, %340 : vector<8x32xf32>
    %344 = arith.addf %342, %343 : vector<8x32xf32>
    %345 = math.tanh %344 : vector<8x32xf32>
    %346 = arith.mulf %341, %345 : vector<8x32xf32>
    %347 = arith.truncf %328 : vector<8x32xf32> to vector<8x32xbf16>
    %348 = arith.index_cast %c4_i32 : i32 to index
    %c0_85 = arith.constant 0 : index
    %c0_86 = arith.constant 0 : index
    %349 = vector.load %arg12[%348, %c0_85, %c0_86] : memref<8x8x64xbf16, #tpu.memory_space<vmem>>, vector<1x8x32xbf16>
    %350 = vector.shape_cast %349 : vector<1x8x32xbf16> to vector<8x32xbf16>
    %351 = vector.shape_cast %347 : vector<8x32xbf16> to vector<1x8x32xbf16>
    tpu.vector_store %arg12[%348, %c0_85, %c0_86], %351 {strides = array<i32>} : memref<8x8x64xbf16, #tpu.memory_space<vmem>>, vector<1x8x32xbf16>,
    %352 = arith.truncf %346 : vector<8x32xf32> to vector<8x32xbf16>
    %353 = arith.index_cast %296 : i32 to index
    %c0_87 = arith.constant 0 : index
    %c32_88 = arith.constant 32 : index
    %354 = vector.load %arg12[%353, %c0_87, %c32_88] : memref<8x8x64xbf16, #tpu.memory_space<vmem>>, vector<1x8x32xbf16>
    %355 = vector.shape_cast %354 : vector<1x8x32xbf16> to vector<8x32xbf16>
    %356 = vector.shape_cast %352 : vector<8x32xbf16> to vector<1x8x32xbf16>
    tpu.vector_store %arg12[%353, %c0_87, %c32_88], %356 {strides = array<i32>} : memref<8x8x64xbf16, #tpu.memory_space<vmem>>, vector<1x8x32xbf16>,
    %c5_i32 = arith.constant 5 : i32
    %c7_i32_89 = arith.constant 7 : i32
    %357 = arith.subi %c7_i32_89, %c5_i32 : i32
    %358 = arith.index_cast %c5_i32 : i32 to index
    %c0_90 = arith.constant 0 : index
    %c0_91 = arith.constant 0 : index
    %359 = vector.load %arg11[%358, %c0_90, %c0_91] : memref<8x8x256xbf16, #tpu.memory_space<vmem>>, vector<1x8x128xbf16>
    %360 = vector.shape_cast %359 : vector<1x8x128xbf16> to vector<8x128xbf16>
    %361 = arith.truncf %328 : vector<8x32xf32> to vector<8x32xbf16>
    %cst_92 = arith.constant dense<0.000000e+00> : vector<8x128xf32>
    %362 = tpu.matmul %361, %37, %cst_92 {dimension_numbers = #tpu.dot_dimension_numbers<[1], [0], [0], [1], [0, 0, 1, 1], [], []>} : vector<8x32xbf16>, vector<32x128xbf16>, vector<8x128xf32> -> vector<8x128xf32>
    %363 = arith.extf %360 : vector<8x128xbf16> to vector<8x128xf32>
    %364 = arith.addf %363, %362 : vector<8x128xf32>
    %365 = arith.index_cast %357 : i32 to index
    %c0_93 = arith.constant 0 : index
    %c128_94 = arith.constant 128 : index
    %366 = vector.load %arg11[%365, %c0_93, %c128_94] : memref<8x8x256xbf16, #tpu.memory_space<vmem>>, vector<1x8x128xbf16>
    %367 = vector.shape_cast %366 : vector<1x8x128xbf16> to vector<8x128xbf16>
    %368 = arith.truncf %346 : vector<8x32xf32> to vector<8x32xbf16>
    %cst_95 = arith.constant dense<0.000000e+00> : vector<8x128xf32>
    %369 = tpu.matmul %368, %38, %cst_95 {dimension_numbers = #tpu.dot_dimension_numbers<[1], [0], [0], [1], [0, 0, 1, 1], [], []>} : vector<8x32xbf16>, vector<32x128xbf16>, vector<8x128xf32> -> vector<8x128xf32>
    %370 = arith.extf %367 : vector<8x128xbf16> to vector<8x128xf32>
    %371 = arith.addf %370, %369 : vector<8x128xf32>
    %372 = arith.negf %364 : vector<8x128xf32>
    %373 = math.exp %372 : vector<8x128xf32>
    %cst_96 = arith.constant 1.000000e+00 : f32
    %374 = vector.broadcast %cst_96 : f32 to vector<8x128xf32>
    %375 = arith.addf %374, %373 : vector<8x128xf32>
    %376 = arith.divf %374, %375 : vector<8x128xf32>
    %377 = vector.broadcast %47 : vector<1x128xf32> to vector<8x128xf32>
    %378 = arith.mulf %376, %377 : vector<8x128xf32>
    %379 = vector.broadcast %50 : vector<1x128xf32> to vector<8x128xf32>
    %380 = arith.subf %378, %379 : vector<8x128xf32>
    %381 = vector.extract_strided_slice %380 {offsets = [0, 0], sizes = [8, 32], strides = [1, 1]} : vector<8x128xf32> to vector<8x32xf32>
    %382 = vector.extract_strided_slice %380 {offsets = [0, 32], sizes = [8, 32], strides = [1, 1]} : vector<8x128xf32> to vector<8x32xf32>
    %383 = vector.extract_strided_slice %380 {offsets = [0, 64], sizes = [8, 32], strides = [1, 1]} : vector<8x128xf32> to vector<8x32xf32>
    %384 = vector.extract_strided_slice %380 {offsets = [0, 96], sizes = [8, 32], strides = [1, 1]} : vector<8x128xf32> to vector<8x32xf32>
    %385 = arith.mulf %382, %326 : vector<8x32xf32>
    %386 = arith.mulf %381, %383 : vector<8x32xf32>
    %387 = arith.addf %385, %386 : vector<8x32xf32>
    %388 = math.tanh %387 : vector<8x32xf32>
    %389 = arith.mulf %384, %388 : vector<8x32xf32>
    %390 = arith.negf %371 : vector<8x128xf32>
    %391 = math.exp %390 : vector<8x128xf32>
    %cst_97 = arith.constant 1.000000e+00 : f32
    %392 = vector.broadcast %cst_97 : f32 to vector<8x128xf32>
    %393 = arith.addf %392, %391 : vector<8x128xf32>
    %394 = arith.divf %392, %393 : vector<8x128xf32>
    %395 = vector.broadcast %47 : vector<1x128xf32> to vector<8x128xf32>
    %396 = arith.mulf %394, %395 : vector<8x128xf32>
    %397 = vector.broadcast %50 : vector<1x128xf32> to vector<8x128xf32>
    %398 = arith.subf %396, %397 : vector<8x128xf32>
    %399 = vector.extract_strided_slice %398 {offsets = [0, 0], sizes = [8, 32], strides = [1, 1]} : vector<8x128xf32> to vector<8x32xf32>
    %400 = vector.extract_strided_slice %398 {offsets = [0, 32], sizes = [8, 32], strides = [1, 1]} : vector<8x128xf32> to vector<8x32xf32>
    %401 = vector.extract_strided_slice %398 {offsets = [0, 64], sizes = [8, 32], strides = [1, 1]} : vector<8x128xf32> to vector<8x32xf32>
    %402 = vector.extract_strided_slice %398 {offsets = [0, 96], sizes = [8, 32], strides = [1, 1]} : vector<8x128xf32> to vector<8x32xf32>
    %403 = arith.mulf %400, %344 : vector<8x32xf32>
    %404 = arith.mulf %399, %401 : vector<8x32xf32>
    %405 = arith.addf %403, %404 : vector<8x32xf32>
    %406 = math.tanh %405 : vector<8x32xf32>
    %407 = arith.mulf %402, %406 : vector<8x32xf32>
    %408 = arith.truncf %389 : vector<8x32xf32> to vector<8x32xbf16>
    %409 = arith.index_cast %c5_i32 : i32 to index
    %c0_98 = arith.constant 0 : index
    %c0_99 = arith.constant 0 : index
    %410 = vector.load %arg12[%409, %c0_98, %c0_99] : memref<8x8x64xbf16, #tpu.memory_space<vmem>>, vector<1x8x32xbf16>
    %411 = vector.shape_cast %410 : vector<1x8x32xbf16> to vector<8x32xbf16>
    %412 = vector.shape_cast %408 : vector<8x32xbf16> to vector<1x8x32xbf16>
    tpu.vector_store %arg12[%409, %c0_98, %c0_99], %412 {strides = array<i32>} : memref<8x8x64xbf16, #tpu.memory_space<vmem>>, vector<1x8x32xbf16>,
    %413 = arith.truncf %407 : vector<8x32xf32> to vector<8x32xbf16>
    %414 = arith.index_cast %357 : i32 to index
    %c0_100 = arith.constant 0 : index
    %c32_101 = arith.constant 32 : index
    %415 = vector.load %arg12[%414, %c0_100, %c32_101] : memref<8x8x64xbf16, #tpu.memory_space<vmem>>, vector<1x8x32xbf16>
    %416 = vector.shape_cast %415 : vector<1x8x32xbf16> to vector<8x32xbf16>
    %417 = vector.shape_cast %413 : vector<8x32xbf16> to vector<1x8x32xbf16>
    tpu.vector_store %arg12[%414, %c0_100, %c32_101], %417 {strides = array<i32>} : memref<8x8x64xbf16, #tpu.memory_space<vmem>>, vector<1x8x32xbf16>,
    %c6_i32 = arith.constant 6 : i32
    %c7_i32_102 = arith.constant 7 : i32
    %418 = arith.subi %c7_i32_102, %c6_i32 : i32
    %419 = arith.index_cast %c6_i32 : i32 to index
    %c0_103 = arith.constant 0 : index
    %c0_104 = arith.constant 0 : index
    %420 = vector.load %arg11[%419, %c0_103, %c0_104] : memref<8x8x256xbf16, #tpu.memory_space<vmem>>, vector<1x8x128xbf16>
    %421 = vector.shape_cast %420 : vector<1x8x128xbf16> to vector<8x128xbf16>
    %422 = arith.truncf %389 : vector<8x32xf32> to vector<8x32xbf16>
    %cst_105 = arith.constant dense<0.000000e+00> : vector<8x128xf32>
    %423 = tpu.matmul %422, %37, %cst_105 {dimension_numbers = #tpu.dot_dimension_numbers<[1], [0], [0], [1], [0, 0, 1, 1], [], []>} : vector<8x32xbf16>, vector<32x128xbf16>, vector<8x128xf32> -> vector<8x128xf32>
    %424 = arith.extf %421 : vector<8x128xbf16> to vector<8x128xf32>
    %425 = arith.addf %424, %423 : vector<8x128xf32>
    %426 = arith.index_cast %418 : i32 to index
    %c0_106 = arith.constant 0 : index
    %c128_107 = arith.constant 128 : index
    %427 = vector.load %arg11[%426, %c0_106, %c128_107] : memref<8x8x256xbf16, #tpu.memory_space<vmem>>, vector<1x8x128xbf16>
    %428 = vector.shape_cast %427 : vector<1x8x128xbf16> to vector<8x128xbf16>
    %429 = arith.truncf %407 : vector<8x32xf32> to vector<8x32xbf16>
    %cst_108 = arith.constant dense<0.000000e+00> : vector<8x128xf32>
    %430 = tpu.matmul %429, %38, %cst_108 {dimension_numbers = #tpu.dot_dimension_numbers<[1], [0], [0], [1], [0, 0, 1, 1], [], []>} : vector<8x32xbf16>, vector<32x128xbf16>, vector<8x128xf32> -> vector<8x128xf32>
    %431 = arith.extf %428 : vector<8x128xbf16> to vector<8x128xf32>
    %432 = arith.addf %431, %430 : vector<8x128xf32>
    %433 = arith.negf %425 : vector<8x128xf32>
    %434 = math.exp %433 : vector<8x128xf32>
    %cst_109 = arith.constant 1.000000e+00 : f32
    %435 = vector.broadcast %cst_109 : f32 to vector<8x128xf32>
    %436 = arith.addf %435, %434 : vector<8x128xf32>
    %437 = arith.divf %435, %436 : vector<8x128xf32>
    %438 = vector.broadcast %47 : vector<1x128xf32> to vector<8x128xf32>
    %439 = arith.mulf %437, %438 : vector<8x128xf32>
    %440 = vector.broadcast %50 : vector<1x128xf32> to vector<8x128xf32>
    %441 = arith.subf %439, %440 : vector<8x128xf32>
    %442 = vector.extract_strided_slice %441 {offsets = [0, 0], sizes = [8, 32], strides = [1, 1]} : vector<8x128xf32> to vector<8x32xf32>
    %443 = vector.extract_strided_slice %441 {offsets = [0, 32], sizes = [8, 32], strides = [1, 1]} : vector<8x128xf32> to vector<8x32xf32>
    %444 = vector.extract_strided_slice %441 {offsets = [0, 64], sizes = [8, 32], strides = [1, 1]} : vector<8x128xf32> to vector<8x32xf32>
    %445 = vector.extract_strided_slice %441 {offsets = [0, 96], sizes = [8, 32], strides = [1, 1]} : vector<8x128xf32> to vector<8x32xf32>
    %446 = arith.mulf %443, %387 : vector<8x32xf32>
    %447 = arith.mulf %442, %444 : vector<8x32xf32>
    %448 = arith.addf %446, %447 : vector<8x32xf32>
    %449 = math.tanh %448 : vector<8x32xf32>
    %450 = arith.mulf %445, %449 : vector<8x32xf32>
    %451 = arith.negf %432 : vector<8x128xf32>
    %452 = math.exp %451 : vector<8x128xf32>
    %cst_110 = arith.constant 1.000000e+00 : f32
    %453 = vector.broadcast %cst_110 : f32 to vector<8x128xf32>
    %454 = arith.addf %453, %452 : vector<8x128xf32>
    %455 = arith.divf %453, %454 : vector<8x128xf32>
    %456 = vector.broadcast %47 : vector<1x128xf32> to vector<8x128xf32>
    %457 = arith.mulf %455, %456 : vector<8x128xf32>
    %458 = vector.broadcast %50 : vector<1x128xf32> to vector<8x128xf32>
    %459 = arith.subf %457, %458 : vector<8x128xf32>
    %460 = vector.extract_strided_slice %459 {offsets = [0, 0], sizes = [8, 32], strides = [1, 1]} : vector<8x128xf32> to vector<8x32xf32>
    %461 = vector.extract_strided_slice %459 {offsets = [0, 32], sizes = [8, 32], strides = [1, 1]} : vector<8x128xf32> to vector<8x32xf32>
    %462 = vector.extract_strided_slice %459 {offsets = [0, 64], sizes = [8, 32], strides = [1, 1]} : vector<8x128xf32> to vector<8x32xf32>
    %463 = vector.extract_strided_slice %459 {offsets = [0, 96], sizes = [8, 32], strides = [1, 1]} : vector<8x128xf32> to vector<8x32xf32>
    %464 = arith.mulf %461, %405 : vector<8x32xf32>
    %465 = arith.mulf %460, %462 : vector<8x32xf32>
    %466 = arith.addf %464, %465 : vector<8x32xf32>
    %467 = math.tanh %466 : vector<8x32xf32>
    %468 = arith.mulf %463, %467 : vector<8x32xf32>
    %469 = arith.truncf %450 : vector<8x32xf32> to vector<8x32xbf16>
    %470 = arith.index_cast %c6_i32 : i32 to index
    %c0_111 = arith.constant 0 : index
    %c0_112 = arith.constant 0 : index
    %471 = vector.load %arg12[%470, %c0_111, %c0_112] : memref<8x8x64xbf16, #tpu.memory_space<vmem>>, vector<1x8x32xbf16>
    %472 = vector.shape_cast %471 : vector<1x8x32xbf16> to vector<8x32xbf16>
    %473 = vector.shape_cast %469 : vector<8x32xbf16> to vector<1x8x32xbf16>
    tpu.vector_store %arg12[%470, %c0_111, %c0_112], %473 {strides = array<i32>} : memref<8x8x64xbf16, #tpu.memory_space<vmem>>, vector<1x8x32xbf16>,
    %474 = arith.truncf %468 : vector<8x32xf32> to vector<8x32xbf16>
    %475 = arith.index_cast %418 : i32 to index
    %c0_113 = arith.constant 0 : index
    %c32_114 = arith.constant 32 : index
    %476 = vector.load %arg12[%475, %c0_113, %c32_114] : memref<8x8x64xbf16, #tpu.memory_space<vmem>>, vector<1x8x32xbf16>
    %477 = vector.shape_cast %476 : vector<1x8x32xbf16> to vector<8x32xbf16>
    %478 = vector.shape_cast %474 : vector<8x32xbf16> to vector<1x8x32xbf16>
    tpu.vector_store %arg12[%475, %c0_113, %c32_114], %478 {strides = array<i32>} : memref<8x8x64xbf16, #tpu.memory_space<vmem>>, vector<1x8x32xbf16>,
    %c7_i32_115 = arith.constant 7 : i32
    %c7_i32_116 = arith.constant 7 : i32
    %479 = arith.subi %c7_i32_116, %c7_i32_115 : i32
    %480 = arith.index_cast %c7_i32_115 : i32 to index
    %c0_117 = arith.constant 0 : index
    %c0_118 = arith.constant 0 : index
    %481 = vector.load %arg11[%480, %c0_117, %c0_118] : memref<8x8x256xbf16, #tpu.memory_space<vmem>>, vector<1x8x128xbf16>
    %482 = vector.shape_cast %481 : vector<1x8x128xbf16> to vector<8x128xbf16>
    %483 = arith.truncf %450 : vector<8x32xf32> to vector<8x32xbf16>
    %cst_119 = arith.constant dense<0.000000e+00> : vector<8x128xf32>
    %484 = tpu.matmul %483, %37, %cst_119 {dimension_numbers = #tpu.dot_dimension_numbers<[1], [0], [0], [1], [0, 0, 1, 1], [], []>} : vector<8x32xbf16>, vector<32x128xbf16>, vector<8x128xf32> -> vector<8x128xf32>
    %485 = arith.extf %482 : vector<8x128xbf16> to vector<8x128xf32>
    %486 = arith.addf %485, %484 : vector<8x128xf32>
    %487 = arith.index_cast %479 : i32 to index
    %c0_120 = arith.constant 0 : index
    %c128_121 = arith.constant 128 : index
    %488 = vector.load %arg11[%487, %c0_120, %c128_121] : memref<8x8x256xbf16, #tpu.memory_space<vmem>>, vector<1x8x128xbf16>
    %489 = vector.shape_cast %488 : vector<1x8x128xbf16> to vector<8x128xbf16>
    %490 = arith.truncf %468 : vector<8x32xf32> to vector<8x32xbf16>
    %cst_122 = arith.constant dense<0.000000e+00> : vector<8x128xf32>
    %491 = tpu.matmul %490, %38, %cst_122 {dimension_numbers = #tpu.dot_dimension_numbers<[1], [0], [0], [1], [0, 0, 1, 1], [], []>} : vector<8x32xbf16>, vector<32x128xbf16>, vector<8x128xf32> -> vector<8x128xf32>
    %492 = arith.extf %489 : vector<8x128xbf16> to vector<8x128xf32>
    %493 = arith.addf %492, %491 : vector<8x128xf32>
    %494 = arith.negf %486 : vector<8x128xf32>
    %495 = math.exp %494 : vector<8x128xf32>
    %cst_123 = arith.constant 1.000000e+00 : f32
    %496 = vector.broadcast %cst_123 : f32 to vector<8x128xf32>
    %497 = arith.addf %496, %495 : vector<8x128xf32>
    %498 = arith.divf %496, %497 : vector<8x128xf32>
    %499 = vector.broadcast %47 : vector<1x128xf32> to vector<8x128xf32>
    %500 = arith.mulf %498, %499 : vector<8x128xf32>
    %501 = vector.broadcast %50 : vector<1x128xf32> to vector<8x128xf32>
    %502 = arith.subf %500, %501 : vector<8x128xf32>
    %503 = vector.extract_strided_slice %502 {offsets = [0, 0], sizes = [8, 32], strides = [1, 1]} : vector<8x128xf32> to vector<8x32xf32>
    %504 = vector.extract_strided_slice %502 {offsets = [0, 32], sizes = [8, 32], strides = [1, 1]} : vector<8x128xf32> to vector<8x32xf32>
    %505 = vector.extract_strided_slice %502 {offsets = [0, 64], sizes = [8, 32], strides = [1, 1]} : vector<8x128xf32> to vector<8x32xf32>
    %506 = vector.extract_strided_slice %502 {offsets = [0, 96], sizes = [8, 32], strides = [1, 1]} : vector<8x128xf32> to vector<8x32xf32>
    %507 = arith.mulf %504, %448 : vector<8x32xf32>
    %508 = arith.mulf %503, %505 : vector<8x32xf32>
    %509 = arith.addf %507, %508 : vector<8x32xf32>
    %510 = math.tanh %509 : vector<8x32xf32>
    %511 = arith.mulf %506, %510 : vector<8x32xf32>
    %512 = arith.negf %493 : vector<8x128xf32>
    %513 = math.exp %512 : vector<8x128xf32>
    %cst_124 = arith.constant 1.000000e+00 : f32
    %514 = vector.broadcast %cst_124 : f32 to vector<8x128xf32>
    %515 = arith.addf %514, %513 : vector<8x128xf32>
    %516 = arith.divf %514, %515 : vector<8x128xf32>
    %517 = vector.broadcast %47 : vector<1x128xf32> to vector<8x128xf32>
    %518 = arith.mulf %516, %517 : vector<8x128xf32>
    %519 = vector.broadcast %50 : vector<1x128xf32> to vector<8x128xf32>
    %520 = arith.subf %518, %519 : vector<8x128xf32>
    %521 = vector.extract_strided_slice %520 {offsets = [0, 0], sizes = [8, 32], strides = [1, 1]} : vector<8x128xf32> to vector<8x32xf32>
    %522 = vector.extract_strided_slice %520 {offsets = [0, 32], sizes = [8, 32], strides = [1, 1]} : vector<8x128xf32> to vector<8x32xf32>
    %523 = vector.extract_strided_slice %520 {offsets = [0, 64], sizes = [8, 32], strides = [1, 1]} : vector<8x128xf32> to vector<8x32xf32>
    %524 = vector.extract_strided_slice %520 {offsets = [0, 96], sizes = [8, 32], strides = [1, 1]} : vector<8x128xf32> to vector<8x32xf32>
    %525 = arith.mulf %522, %466 : vector<8x32xf32>
    %526 = arith.mulf %521, %523 : vector<8x32xf32>
    %527 = arith.addf %525, %526 : vector<8x32xf32>
    %528 = math.tanh %527 : vector<8x32xf32>
    %529 = arith.mulf %524, %528 : vector<8x32xf32>
    %530 = arith.truncf %511 : vector<8x32xf32> to vector<8x32xbf16>
    %531 = arith.index_cast %c7_i32_115 : i32 to index
    %c0_125 = arith.constant 0 : index
    %c0_126 = arith.constant 0 : index
    %532 = vector.load %arg12[%531, %c0_125, %c0_126] : memref<8x8x64xbf16, #tpu.memory_space<vmem>>, vector<1x8x32xbf16>
    %533 = vector.shape_cast %532 : vector<1x8x32xbf16> to vector<8x32xbf16>
    %534 = vector.shape_cast %530 : vector<8x32xbf16> to vector<1x8x32xbf16>
    tpu.vector_store %arg12[%531, %c0_125, %c0_126], %534 {strides = array<i32>} : memref<8x8x64xbf16, #tpu.memory_space<vmem>>, vector<1x8x32xbf16>,
    %535 = arith.truncf %529 : vector<8x32xf32> to vector<8x32xbf16>
    %536 = arith.index_cast %479 : i32 to index
    %c0_127 = arith.constant 0 : index
    %c32_128 = arith.constant 32 : index
    %537 = vector.load %arg12[%536, %c0_127, %c32_128] : memref<8x8x64xbf16, #tpu.memory_space<vmem>>, vector<1x8x32xbf16>
    %538 = vector.shape_cast %537 : vector<1x8x32xbf16> to vector<8x32xbf16>
    %539 = vector.shape_cast %535 : vector<8x32xbf16> to vector<1x8x32xbf16>
    tpu.vector_store %arg12[%536, %c0_127, %c32_128], %539 {strides = array<i32>} : memref<8x8x64xbf16, #tpu.memory_space<vmem>>, vector<1x8x32xbf16>,
    %c8_i32 = arith.constant 8 : i32
    %c0_129 = arith.constant 0 : index
    %c0_130 = arith.constant 0 : index
    %c0_131 = arith.constant 0 : index
    %540 = vector.load %arg12[%c0_129, %c0_130, %c0_131] : memref<8x8x64xbf16, #tpu.memory_space<vmem>>, vector<8x8x64xbf16>
    %541 = vector.shape_cast %540 : vector<8x8x64xbf16> to vector<64x64xbf16>
    %c0_132 = arith.constant 0 : index
    %c0_133 = arith.constant 0 : index
    %542 = vector.load %arg8[%c0_132, %c0_133] : memref<64x32xbf16, #tpu.memory_space<vmem>>, vector<64x32xbf16>
    %cst_134 = arith.constant dense<0.000000e+00> : vector<64x32xf32>
    %543 = tpu.matmul %541, %542, %cst_134 {dimension_numbers = #tpu.dot_dimension_numbers<[1], [0], [0], [1], [0, 0, 1, 1], [], []>} : vector<64x64xbf16>, vector<64x32xbf16>, vector<64x32xf32> -> vector<64x32xf32>
    %c0_135 = arith.constant 0 : index
    %c0_136 = arith.constant 0 : index
    %544 = vector.load %arg9[%c0_135, %c0_136] : memref<1x32xf32, #tpu.memory_space<vmem>>, vector<1x32xf32>
    %545 = vector.broadcast %544 : vector<1x32xf32> to vector<64x32xf32>
    %546 = arith.addf %543, %545 : vector<64x32xf32>
    %547 = vector.shape_cast %546 : vector<64x32xf32> to vector<8x8x32xf32>
    %548 = arith.addf %547, %0 : vector<8x8x32xf32>
    %c0_137 = arith.constant 0 : index
    %c0_138 = arith.constant 0 : index
    %c0_139 = arith.constant 0 : index
    %549 = vector.load %arg10[%c0_137, %c0_138, %c0_139] : memref<8x8x32xf32, #tpu.memory_space<vmem>>, vector<8x8x32xf32>
    tpu.vector_store %arg10[%c0_137, %c0_138, %c0_139], %548 {strides = array<i32>} : memref<8x8x32xf32, #tpu.memory_space<vmem>>, vector<8x8x32xf32>,
    return
  }
  func.func @transform_0(%arg0: i32) -> (i32, i32, i32) {
    %c0_i32 = arith.constant 0 : i32
    %c0_i32_0 = arith.constant 0 : i32
    %c0_i32_1 = arith.constant 0 : i32
    return %c0_i32, %arg0, %c0_i32_0 : i32, i32, i32
  }
  func.func @transform_1(%arg0: i32) -> (i32, i32) {
    %c0_i32 = arith.constant 0 : i32
    %c0_i32_0 = arith.constant 0 : i32
    %c0_i32_1 = arith.constant 0 : i32
    return %c0_i32, %c0_i32_0 : i32, i32
  }
  func.func @transform_2(%arg0: i32) -> (i32, i32) {
    %c0_i32 = arith.constant 0 : i32
    %c0_i32_0 = arith.constant 0 : i32
    %c0_i32_1 = arith.constant 0 : i32
    return %c0_i32, %c0_i32_0 : i32, i32
  }
  func.func @transform_3(%arg0: i32) -> (i32, i32) {
    %c0_i32 = arith.constant 0 : i32
    %c0_i32_0 = arith.constant 0 : i32
    %c0_i32_1 = arith.constant 0 : i32
    return %c0_i32, %c0_i32_0 : i32, i32
  }
  func.func @transform_4(%arg0: i32) -> (i32, i32) {
    %c0_i32 = arith.constant 0 : i32
    %c0_i32_0 = arith.constant 0 : i32
    %c0_i32_1 = arith.constant 0 : i32
    return %c0_i32, %c0_i32_0 : i32, i32
  }
  func.func @transform_5(%arg0: i32) -> (i32, i32) {
    %c0_i32 = arith.constant 0 : i32
    %c0_i32_0 = arith.constant 0 : i32
    %c0_i32_1 = arith.constant 0 : i32
    return %c0_i32, %c0_i32_0 : i32, i32
  }
  func.func @transform_6(%arg0: i32) -> (i32, i32) {
    %c0_i32 = arith.constant 0 : i32
    %c0_i32_0 = arith.constant 0 : i32
    %c0_i32_1 = arith.constant 0 : i32
    return %c0_i32, %c0_i32_0 : i32, i32
  }
  func.func @transform_7(%arg0: i32) -> (i32, i32) {
    %c0_i32 = arith.constant 0 : i32
    %c0_i32_0 = arith.constant 0 : i32
    %c0_i32_1 = arith.constant 0 : i32
    return %c0_i32, %c0_i32_0 : i32, i32
  }
  func.func @transform_8(%arg0: i32) -> (i32, i32) {
    %c0_i32 = arith.constant 0 : i32
    %c0_i32_0 = arith.constant 0 : i32
    %c0_i32_1 = arith.constant 0 : i32
    return %c0_i32, %c0_i32_0 : i32, i32
  }
  func.func @transform_9(%arg0: i32) -> (i32, i32, i32) {
    %c0_i32 = arith.constant 0 : i32
    %c0_i32_0 = arith.constant 0 : i32
    %c0_i32_1 = arith.constant 0 : i32
    return %c0_i32, %arg0, %c0_i32_0 : i32, i32, i32
  }
}

</mosaic_0001>

<llo_original>
// kernel: tpu_custom_call.1
$region0: #{tpu_custom_call.1}
  #allocation0 [shape = 'u32[]', space=smem, size = 0x4, offset = 0x4, fixed_abs, tag = 'smem constant byte address 0x4 - core index']
  #allocation1 [shape = 'u32[144,128]{1,0:T(1,128)}', space=vmem, size = 0x12000, scoped, tag = 'internal scratch']
  #allocation2 [shape = 'bf16[8,8,256]{2,1,0:T(8,128)(2,1)}', space=vmem, size = 0x8000, scoped, tag = 'scratch operand']
  #allocation3 [shape = 'bf16[8,8,64]{2,1,0:T(8,128)(2,1)}', space=vmem, size = 0x4000, scoped, tag = 'scratch operand']
  %s0 = inlined_call_operand.hbm [shape: f32[8,8,32], index: 0, kind: input, shape index: {}]
  %s1 = inlined_call_operand.hbm [shape: f32[1,32], index: 1, kind: input, shape index: {}]
  %s2 = inlined_call_operand.hbm [shape: f32[1,32], index: 2, kind: input, shape index: {}]
  %s3 = inlined_call_operand.vmem [shape: bf16[32,256], index: 3, kind: input, shape index: {}]
  %s4 = inlined_call_operand.vmem [shape: f32[1,256], index: 4, kind: input, shape index: {}]
  %s5 = inlined_call_operand.vmem [shape: bf16[32,128], index: 5, kind: input, shape index: {}]
  %s6 = inlined_call_operand.vmem [shape: bf16[32,128], index: 6, kind: input, shape index: {}]
  %s7 = inlined_call_operand.vmem [shape: bf16[64,32], index: 7, kind: input, shape index: {}]
  %s8 = inlined_call_operand.vmem [shape: f32[1,32], index: 8, kind: input, shape index: {}]
  %s9 = inlined_call_operand.hbm [shape: f32[8,8,32], index: 9, kind: output, shape index: {}]
  %s10 = sld [smem:[#allocation0]]
  $region58: #{tpu_custom_call.1} parent=0
    _
  %s12 = ssub.s32 1, %s10
  %s13 = scalar_select 0, %s12, %s10
  $region1: #{tpu_custom_call.1} parent=0
    #allocation4 [shape = 'u8[32768]{0}', space=vmem, size = 0x8000, scoped, tag = 'input window, operand 0, single buffered']
    #allocation5 [shape = 's32[1]{0}', space=sflag, size = 0x4, scoped, tag = 'scoped memory for tpu_custom_call.1']
    #allocation6 [shape = 's32[1]{0}', space=sflag, size = 0x4, scoped, tag = 'scoped memory for tpu_custom_call.1']
    #allocation7 [shape = 'u8[512]{0}', space=vmem, size = 0x400, scoped, tag = 'input window, operand 1, single buffered']
    #allocation8 [shape = 's32[1]{0}', space=sflag, size = 0x4, scoped, tag = 'scoped memory for tpu_custom_call.1']
    #allocation9 [shape = 'u8[512]{0}', space=vmem, size = 0x400, scoped, tag = 'input window, operand 2, single buffered']
    #allocation10 [shape = 'u8[32768]{0}', space=vmem, size = 0x8000, scoped, tag = 'output window, operand 0, single buffered']
    %14 = vsyncpa [#allocation5], 0
    %15 = vsyncpa [#allocation8], 0
    %16 = vsyncpa [#allocation6], 0
    // Predicated region
    $region2: #{tpu_custom_call.1} parent=1 // pred_check
      _
    $region3: #{tpu_custom_call.1} parent=1 // pred_check_branch
      %18 = sbr.rel (0) target = $region5
    $region4: #{tpu_custom_call.1} parent=1 // pred_region
      %s20 = ssub.s32 1024, 1024
      %21 = vsyncadd [#allocation5], %s20
      %s22 = sshll.u32 [#allocation4], 4
      %s23 = int_to_ptr.vmem [resolvable:$true] %s22
      %28 = dma.hbm_to_vmem [thread:$0]  %s0, 1024, %s23, [#allocation5], 128, 128, 8
    $region5: #{tpu_custom_call.1} parent=1 // pred_fallthru
      _
    // Predicated region
    $region6: #{tpu_custom_call.1} parent=1 // pred_check
      _
    $region7: #{tpu_custom_call.1} parent=1 // pred_check_branch
      %30 = sbr.rel (0) target = $region9
    $region8: #{tpu_custom_call.1} parent=1 // pred_region
      %s32 = ssub.s32 16, 16
      %33 = vsyncadd [#allocation8], %s32
      %s35 = sshll.u32 [#allocation7], 4
      %s36 = int_to_ptr.vmem [resolvable:$true] %s35
      %38 = dma.hbm_to_vmem [thread:$0]  %s1, 16, %s36, [#allocation8]
    $region9: #{tpu_custom_call.1} parent=1 // pred_fallthru
      _
    // Predicated region
    $region10: #{tpu_custom_call.1} parent=1 // pred_check
      _
    $region11: #{tpu_custom_call.1} parent=1 // pred_check_branch
      %40 = sbr.rel (0) target = $region13
    $region12: #{tpu_custom_call.1} parent=1 // pred_region
      %s42 = ssub.s32 16, 16
      %43 = vsyncadd [#allocation8], %s42
      %s45 = sshll.u32 [#allocation9], 4
      %s46 = int_to_ptr.vmem [resolvable:$true] %s45
      %48 = dma.hbm_to_vmem [thread:$0]  %s2, 16, %s46, [#allocation8]
    $region13: #{tpu_custom_call.1} parent=1 // pred_fallthru
      _
    // Predicated region
    $region14: #{tpu_custom_call.1} parent=1 // pred_check
      _
    $region15: #{tpu_custom_call.1} parent=1 // pred_check_branch
      %50 = sbr.rel (0) target = $region17
    $region16: #{tpu_custom_call.1} parent=1 // pred_region
      _
    $region17: #{tpu_custom_call.1} parent=1 // pred_fallthru
      _
    // Predicated region
    $region18: #{tpu_custom_call.1} parent=1 // pred_check
      _
    $region19: #{tpu_custom_call.1} parent=1 // pred_check_branch
      %52 = sbr.rel (0) target = $region21
    $region20: #{tpu_custom_call.1} parent=1 // pred_region
      _
    $region21: #{tpu_custom_call.1} parent=1 // pred_fallthru
      _
    // Predicated region
    $region22: #{tpu_custom_call.1} parent=1 // pred_check
      _
    $region23: #{tpu_custom_call.1} parent=1 // pred_check_branch
      %54 = sbr.rel (0) target = $region25
    $region24: #{tpu_custom_call.1} parent=1 // pred_region
      _
    $region25: #{tpu_custom_call.1} parent=1 // pred_fallthru
      _
    // Predicated region
    $region26: #{tpu_custom_call.1} parent=1 // pred_check
      _
    $region27: #{tpu_custom_call.1} parent=1 // pred_check_branch
      %56 = sbr.rel (0) target = $region29
    $region28: #{tpu_custom_call.1} parent=1 // pred_region
      _
    $region29: #{tpu_custom_call.1} parent=1 // pred_fallthru
      _
    // Predicated region
    $region30: #{tpu_custom_call.1} parent=1 // pred_check
      _
    $region31: #{tpu_custom_call.1} parent=1 // pred_check_branch
      %58 = sbr.rel (0) target = $region33
    $region32: #{tpu_custom_call.1} parent=1 // pred_region
      _
    $region33: #{tpu_custom_call.1} parent=1 // pred_fallthru
      _
    // Predicated region
    $region34: #{tpu_custom_call.1} parent=1 // pred_check
      _
    $region35: #{tpu_custom_call.1} parent=1 // pred_check_branch
      %60 = sbr.rel (0) target = $region37
    $region36: #{tpu_custom_call.1} parent=1 // pred_region
      _
    $region37: #{tpu_custom_call.1} parent=1 // pred_fallthru
      _
    // Predicated region
    $region38: #{tpu_custom_call.1} parent=1 // pred_check
      _
    $region39: #{tpu_custom_call.1} parent=1 // pred_check_branch
      %62 = sbr.rel (0) target = $region41
    $region40: #{tpu_custom_call.1} parent=1 // pred_region
      %63 = dma.done [#allocation5], 1024
    $region41: #{tpu_custom_call.1} parent=1 // pred_fallthru
      _
    // Predicated region
    $region42: #{tpu_custom_call.1} parent=1 // pred_check
      _
    $region43: #{tpu_custom_call.1} parent=1 // pred_check_branch
      %65 = sbr.rel (0) target = $region45
    $region44: #{tpu_custom_call.1} parent=1 // pred_region
      %66 = dma.done [#allocation8], 16
    $region45: #{tpu_custom_call.1} parent=1 // pred_fallthru
      _
    // Predicated region
    $region46: #{tpu_custom_call.1} parent=1 // pred_check
      _
    $region47: #{tpu_custom_call.1} parent=1 // pred_check_branch
      %68 = sbr.rel (0) target = $region49
    $region48: #{tpu_custom_call.1} parent=1 // pred_region
      %69 = dma.done [#allocation8], 16
    $region49: #{tpu_custom_call.1} parent=1 // pred_fallthru
      _
    %v71 = vld [vmem:[#allocation4] sm:$0xff]
    %v72 = vld [vmem:[#allocation4 + $0x8] sm:$0xff]
    %v73 = vld [vmem:[#allocation4 + $0x10] sm:$0xff]
    %v74 = vld [vmem:[#allocation4 + $0x18] sm:$0xff]
    %v75 = vld [vmem:[#allocation4 + $0x20] sm:$0xff]
    %v76 = vld [vmem:[#allocation4 + $0x28] sm:$0xff]
    %v77 = vld [vmem:[#allocation4 + $0x30] sm:$0xff]
    %v78 = vld [vmem:[#allocation4 + $0x38] sm:$0xff]
    %vm79 = vcmask 261120
    %v80 = vsel %vm79, %v71, 0.0
    %81 = vadd.xlane.f32.xlu0 %v80
    %v82 = vpop.xlane.xlu0 %81
    %v83 = vsel %vm79, %v72, 0.0
    %84 = vadd.xlane.f32.xlu0 %v83
    %v85 = vpop.xlane.xlu0 %84
    %v86 = vsel %vm79, %v73, 0.0
    %87 = vadd.xlane.f32.xlu0 %v86
    %v88 = vpop.xlane.xlu0 %87
    %v89 = vsel %vm79, %v74, 0.0
    %90 = vadd.xlane.f32.xlu0 %v89
    %v91 = vpop.xlane.xlu0 %90
    %v92 = vsel %vm79, %v75, 0.0
    %93 = vadd.xlane.f32.xlu0 %v92
    %v94 = vpop.xlane.xlu0 %93
    %v95 = vsel %vm79, %v76, 0.0
    %96 = vadd.xlane.f32.xlu0 %v95
    %v97 = vpop.xlane.xlu0 %96
    %v98 = vsel %vm79, %v77, 0.0
    %99 = vadd.xlane.f32.xlu0 %v98
    %v100 = vpop.xlane.xlu0 %99
    %v101 = vsel %vm79, %v78, 0.0
    %102 = vadd.xlane.f32.xlu0 %v101
    %v103 = vpop.xlane.xlu0 %102
    %v104 = vrcp.pop 32.0
    %v105 = vmul.f32 %v82, %v104
    %v106 = vmul.f32 %v85, %v104
    %v107 = vmul.f32 %v88, %v104
    %v108 = vmul.f32 %v91, %v104
    %v109 = vmul.f32 %v94, %v104
    %v110 = vmul.f32 %v97, %v104
    %v111 = vmul.f32 %v100, %v104
    %v112 = vmul.f32 %v103, %v104
    %v113 = vsub.f32 %v71, %v105
    %v114 = vsub.f32 %v72, %v106
    %v115 = vsub.f32 %v73, %v107
    %v116 = vsub.f32 %v74, %v108
    %v117 = vsub.f32 %v75, %v109
    %v118 = vsub.f32 %v76, %v110
    %v119 = vsub.f32 %v77, %v111
    %v120 = vsub.f32 %v78, %v112
    %v121 = vmul.f32 %v113, %v113
    %v122 = vmul.f32 %v114, %v114
    %v123 = vmul.f32 %v115, %v115
    %v124 = vmul.f32 %v116, %v116
    %v125 = vmul.f32 %v117, %v117
    %v126 = vmul.f32 %v118, %v118
    %v127 = vmul.f32 %v119, %v119
    %v128 = vmul.f32 %v120, %v120
    %v129 = vsel %vm79, %v121, 0.0
    %130 = vadd.xlane.f32.xlu0 %v129
    %v131 = vpop.xlane.xlu0 %130
    %v132 = vsel %vm79, %v122, 0.0
    %133 = vadd.xlane.f32.xlu0 %v132
    %v134 = vpop.xlane.xlu0 %133
    %v135 = vsel %vm79, %v123, 0.0
    %136 = vadd.xlane.f32.xlu0 %v135
    %v137 = vpop.xlane.xlu0 %136
    %v138 = vsel %vm79, %v124, 0.0
    %139 = vadd.xlane.f32.xlu0 %v138
    %v140 = vpop.xlane.xlu0 %139
    %v141 = vsel %vm79, %v125, 0.0
    %142 = vadd.xlane.f32.xlu0 %v141
    %v143 = vpop.xlane.xlu0 %142
    %v144 = vsel %vm79, %v126, 0.0
    %145 = vadd.xlane.f32.xlu0 %v144
    %v146 = vpop.xlane.xlu0 %145
    %v147 = vsel %vm79, %v127, 0.0
    %148 = vadd.xlane.f32.xlu0 %v147
    %v149 = vpop.xlane.xlu0 %148
    %v150 = vsel %vm79, %v128, 0.0
    %151 = vadd.xlane.f32.xlu0 %v150
    %v152 = vpop.xlane.xlu0 %151
    %v153 = vmul.f32 %v131, %v104
    %v154 = vmul.f32 %v134, %v104
    %v155 = vmul.f32 %v137, %v104
    %v156 = vmul.f32 %v140, %v104
    %v157 = vmul.f32 %v143, %v104
    %v158 = vmul.f32 %v146, %v104
    %v159 = vmul.f32 %v149, %v104
    %v160 = vmul.f32 %v152, %v104
    %v161 = vadd.f32 %v153, 1e-05
    %v162 = vadd.f32 %v154, 1e-05
    %v163 = vadd.f32 %v155, 1e-05
    %v164 = vadd.f32 %v156, 1e-05
    %v165 = vadd.f32 %v157, 1e-05
    %v166 = vadd.f32 %v158, 1e-05
    %v167 = vadd.f32 %v159, 1e-05
    %v168 = vadd.f32 %v160, 1e-05
    %v169 = vrsqrt.pop %v161
    %v170 = vrsqrt.pop %v162
    %v171 = vrsqrt.pop %v163
    %v172 = vrsqrt.pop %v164
    %v173 = vrsqrt.pop %v165
    %v174 = vrsqrt.pop %v166
    %v175 = vrsqrt.pop %v167
    %v176 = vrsqrt.pop %v168
    %v177 = vmul.f32 %v113, %v169
    %v178 = vmul.f32 %v114, %v170
    %v179 = vmul.f32 %v115, %v171
    %v180 = vmul.f32 %v116, %v172
    %v181 = vmul.f32 %v117, %v173
    %v182 = vmul.f32 %v118, %v174
    %v183 = vmul.f32 %v119, %v175
    %v184 = vmul.f32 %v120, %v176
    %v185 = vld [vmem:[#allocation7] sm:$0x1]
    %v187 = vlaneseq
    %v188 = vshrl.u32 %v187, 7
    %v189 = vsub.s32 0, %v188
    %v190 = vrot.slane %v185, %v189
    %v192 = vmul.f32 %v177, %v190
    %v193 = vmul.f32 %v178, %v190
    %v194 = vmul.f32 %v179, %v190
    %v195 = vmul.f32 %v180, %v190
    %v196 = vmul.f32 %v181, %v190
    %v197 = vmul.f32 %v182, %v190
    %v198 = vmul.f32 %v183, %v190
    %v199 = vmul.f32 %v184, %v190
    %v200 = vld [vmem:[#allocation9] sm:$0x1]
    %v202 = vlaneseq
    %v203 = vshrl.u32 %v202, 7
    %v204 = vsub.s32 0, %v203
    %v205 = vrot.slane %v200, %v204
    %v207 = vadd.f32 %v192, %v205
    %v208 = vadd.f32 %v193, %v205
    %v209 = vadd.f32 %v194, %v205
    %v210 = vadd.f32 %v195, %v205
    %v211 = vadd.f32 %v196, %v205
    %v212 = vadd.f32 %v197, %v205
    %v213 = vadd.f32 %v198, %v205
    %v214 = vadd.f32 %v199, %v205
    %v215 = vpack.c.bf16 %v208, %v207
    %v216 = vpack.c.bf16 %v210, %v209
    %v217 = vpack.c.bf16 %v212, %v211
    %v218 = vpack.c.bf16 %v214, %v213
    %v219 = vld [vmem:[%s3] sm:$0xff]
    %v220 = vld [vmem:[%s3 + $0x8] sm:$0xff]
    %v221 = vld [vmem:[%s3 + $0x10] sm:$0xff]
    %v222 = vld [vmem:[%s3 + $0x18] sm:$0xff]
    %v223 = vld [vmem:[%s4] sm:$0x3]
    %v225 = vlaneseq
    %v226 = vshrl.u32 %v225, 7
    %v227 = vsub.s32 0, %v226
    %v228 = vrot.slane %v223, %v227
    %v229 = vlaneseq
    %v230 = vshrl.u32 %v229, 7
    %v231 = vsub.s32 1, %v230
    %v232 = vrot.slane %v223, %v231
    %v239 = vunpack.c.l.b16 %v219
    %v240 = vunpack.c.h.b16 %v219
    %v241 = vunpack.c.l.b16 %v220
    %v242 = vunpack.c.h.b16 %v220
    %v243 = vunpack.c.l.b16 %v221
    %v244 = vunpack.c.h.b16 %v221
    %v245 = vunpack.c.l.b16 %v222
    %v246 = vunpack.c.h.b16 %v222
    %v247 = vpack.c.b16 %v241, %v239
    %v248 = vpack.c.b16 %v242, %v240
    %v249 = vpack.c.b16 %v245, %v243
    %v250 = vpack.c.b16 %v246, %v244
    %v256 = vsel %vm79, %v215, 0
    %v259 = vsel %vm79, %v216, 0
    %v262 = vsel %vm79, %v217, 0
    %v265 = vsel %vm79, %v218, 0
    %267 = vmatprep.subr.bf16.mxu0 %v248
    %268 = vmatpush1.bf16.msra.mxu0 %v247
    %269 = vmatprep.subr.bf16.mxu0 %v250
    %270 = vmatpush1.bf16.msra.mxu0 %v249
    %271 = vmatprep.subr.bf16.mxu0 0
    %272 = vmatpush1.bf16.msra.mxu0 0
    %273 = vmatprep.subr.bf16.mxu0 0
    %274 = vmatpush1.bf16.msra.mxu0 0
    %275 = vmatprep.subr.bf16.mxu0 0
    %276 = vmatpush1.bf16.msra.mxu0 0
    %277 = vmatprep.subr.bf16.mxu0 0
    %278 = vmatpush1.bf16.msra.mxu0 0
    %279 = vmatprep.subr.bf16.mxu0 0
    %280 = vmatpush1.bf16.msra.mxu0 0
    %281 = vmatprep.subr.bf16.mxu0 0
    %282 = vmatpush1.bf16.msra.mxu0 0
    %283 = vmatprep.subr.bf16.mxu0 0
    %284 = vmatpush1.bf16.msra.mxu0 0
    %285 = vmatprep.subr.bf16.mxu0 0
    %286 = vmatpush1.bf16.msra.mxu0 0
    %287 = vmatprep.subr.bf16.mxu0 0
    %288 = vmatpush1.bf16.msra.mxu0 0
    %289 = vmatprep.subr.bf16.mxu0 0
    %290 = vmatpush1.bf16.msra.mxu0 0
    %291 = vmatprep.subr.bf16.mxu0 0
    %292 = vmatpush1.bf16.msra.mxu0 0
    %293 = vmatprep.subr.bf16.mxu0 0
    %294 = vmatpush1.bf16.msra.mxu0 0
    %295 = vmatprep.subr.bf16.mxu0 0
    %296 = vmatpush1.bf16.msra.mxu0 0
    %297 = vmatprep.subr.bf16.mxu0 0
    %298 = vmatpush1.bf16.msra.mxu0 0
    %299 = vmatprep.mubr.bf16.mxu0 0
    %300 = vmatmul.mubr.bf16.gmra.mrb[0].mxu0 %v256
    %v301 = vpop.f32.mrb[0].mxu0
    %v302 = vadd.f32 %v228, %v301
    %v303 = vpop.f32.mrb[0].mxu0
    %v304 = vadd.f32 %v232, %v303
    %v305 = vpop.f32.mrb[0].mxu0
    %v306 = vadd.f32 %v228, %v305
    %v307 = vpop.f32.mrb[0].mxu0
    %v308 = vadd.f32 %v232, %v307
    %309 = vmatprep.mubr.bf16.mxu0 0
    %310 = vmatmul.mubr.bf16.gmra.mrb[0].mxu0 %v259
    %v311 = vpop.f32.mrb[0].mxu0
    %v312 = vadd.f32 %v228, %v311
    %v313 = vpop.f32.mrb[0].mxu0
    %v314 = vadd.f32 %v232, %v313
    %v315 = vpop.f32.mrb[0].mxu0
    %v316 = vadd.f32 %v228, %v315
    %v317 = vpop.f32.mrb[0].mxu0
    %v318 = vadd.f32 %v232, %v317
    %319 = vmatprep.mubr.bf16.mxu0 0
    %320 = vmatmul.mubr.bf16.gmra.mrb[0].mxu0 %v262
    %v321 = vpop.f32.mrb[0].mxu0
    %v322 = vadd.f32 %v228, %v321
    %v323 = vpop.f32.mrb[0].mxu0
    %v324 = vadd.f32 %v232, %v323
    %v325 = vpop.f32.mrb[0].mxu0
    %v326 = vadd.f32 %v228, %v325
    %v327 = vpop.f32.mrb[0].mxu0
    %v328 = vadd.f32 %v232, %v327
    %329 = vmatprep.mubr.bf16.mxu0 0
    %330 = vmatmul.mubr.bf16.gmra.mrb[0].mxu0 %v265
    %v331 = vpop.f32.mrb[0].mxu0
    %v332 = vadd.f32 %v228, %v331
    %v333 = vpop.f32.mrb[0].mxu0
    %v334 = vadd.f32 %v232, %v333
    %v335 = vpop.f32.mrb[0].mxu0
    %v336 = vadd.f32 %v228, %v335
    %v337 = vpop.f32.mrb[0].mxu0
    %v338 = vadd.f32 %v232, %v337
    %339 = vdwg.mxu0
    %v340 = vpack.c.bf16 %v302, %v302
    %v341 = vpack.c.bf16 %v304, %v304
    %v342 = vpack.c.bf16 %v306, %v306
    %v343 = vpack.c.bf16 %v308, %v308
    %v344 = vpack.c.bf16 %v312, %v312
    %v345 = vpack.c.bf16 %v314, %v314
    %v346 = vpack.c.bf16 %v316, %v316
    %v347 = vpack.c.bf16 %v318, %v318
    %v348 = vpack.c.bf16 %v322, %v322
    %v349 = vpack.c.bf16 %v324, %v324
    %v350 = vpack.c.bf16 %v326, %v326
    %v351 = vpack.c.bf16 %v328, %v328
    %v352 = vpack.c.bf16 %v332, %v332
    %v353 = vpack.c.bf16 %v334, %v334
    %v354 = vpack.c.bf16 %v336, %v336
    %v355 = vpack.c.bf16 %v338, %v338
    %v372 = vunpack.c.l.b16 %v340
    %v373 = vunpack.c.l.b16 %v341
    %v374 = vunpack.c.l.b16 %v342
    %v375 = vunpack.c.l.b16 %v343
    %v376 = vunpack.c.l.b16 %v344
    %v377 = vunpack.c.l.b16 %v345
    %v378 = vunpack.c.l.b16 %v346
    %v379 = vunpack.c.l.b16 %v347
    %v380 = vunpack.c.l.b16 %v348
    %v381 = vunpack.c.l.b16 %v349
    %v382 = vunpack.c.l.b16 %v350
    %v383 = vunpack.c.l.b16 %v351
    %v384 = vunpack.c.l.b16 %v352
    %v385 = vunpack.c.l.b16 %v353
    %v386 = vunpack.c.l.b16 %v354
    %v387 = vunpack.c.l.b16 %v355
    %v388 = vpack.c.b16 %v373, %v372
    %v389 = vpack.c.b16 %v375, %v374
    %v390 = vpack.c.b16 %v377, %v376
    %v391 = vpack.c.b16 %v379, %v378
    %v392 = vpack.c.b16 %v381, %v380
    %v393 = vpack.c.b16 %v383, %v382
    %v394 = vpack.c.b16 %v385, %v384
    %v395 = vpack.c.b16 %v387, %v386
    %404 = vst [vmem:[#allocation2] sm:$0xff] %v388
    %405 = vst [vmem:[#allocation2 + $0x8] sm:$0xff] %v389
    %406 = vst [vmem:[#allocation2 + $0x10] sm:$0xff] %v390
    %407 = vst [vmem:[#allocation2 + $0x18] sm:$0xff] %v391
    %408 = vst [vmem:[#allocation2 + $0x20] sm:$0xff] %v392
    %409 = vst [vmem:[#allocation2 + $0x28] sm:$0xff] %v393
    %410 = vst [vmem:[#allocation2 + $0x30] sm:$0xff] %v394
    %411 = vst [vmem:[#allocation2 + $0x38] sm:$0xff] %v395
    %v412 = vld [vmem:[%s5] sm:$0xf]
    %v413 = vld [vmem:[%s5 + $0x4] sm:$0xf]
    %v414 = vld [vmem:[%s5 + $0x8] sm:$0xf]
    %v415 = vld [vmem:[%s5 + $0xc] sm:$0xf]
    %v416 = vld [vmem:[%s6] sm:$0xf]
    %v417 = vld [vmem:[%s6 + $0x4] sm:$0xf]
    %v418 = vld [vmem:[%s6 + $0x8] sm:$0xf]
    %v419 = vld [vmem:[%s6 + $0xc] sm:$0xf]
    %v420 = vlaneseq
    %v421 = vand.u32 %v420, 127
    %vm422 = vcmp.ge.s32.totalorder %v421, 64
    %vm423 = vcmp.lt.s32.totalorder %v421, 96
    %vm424 = vmand %vm422, %vm423
    %v425 = vsel %vm424, 2.0, 1.0
    %v426 = vsel %vm424, 1.0, 0.0
    %v427 = vld [vmem:[#allocation2] sm:$0xf]
    %v432 = vunpack.c.l.b16 %v412
    %v433 = vunpack.c.l.b16 %v413
    %v434 = vunpack.c.l.b16 %v414
    %v435 = vunpack.c.l.b16 %v415
    %v436 = vpack.c.b16 %v433, %v432
    %v437 = vpack.c.b16 %v435, %v434
    %v441 = vsel %vm79, 0, 0
    %443 = vmatprep.subr.bf16.mxu0 0
    %444 = vmatpush1.bf16.msra.mxu0 %v436
    %445 = vmatprep.subr.bf16.mxu0 0
    %446 = vmatpush1.bf16.msra.mxu0 %v437
    %447 = vmatprep.subr.bf16.mxu0 0
    %448 = vmatpush1.bf16.msra.mxu0 0
    %449 = vmatprep.subr.bf16.mxu0 0
    %450 = vmatpush1.bf16.msra.mxu0 0
    %451 = vmatprep.subr.bf16.mxu0 0
    %452 = vmatpush1.bf16.msra.mxu0 0
    %453 = vmatprep.subr.bf16.mxu0 0
    %454 = vmatpush1.bf16.msra.mxu0 0
    %455 = vmatprep.subr.bf16.mxu0 0
    %456 = vmatpush1.bf16.msra.mxu0 0
    %457 = vmatprep.subr.bf16.mxu0 0
    %458 = vmatpush1.bf16.msra.mxu0 0
    %459 = vmatprep.subr.bf16.mxu0 0
    %460 = vmatpush1.bf16.msra.mxu0 0
    %461 = vmatprep.subr.bf16.mxu0 0
    %462 = vmatpush1.bf16.msra.mxu0 0
    %463 = vmatprep.subr.bf16.mxu0 0
    %464 = vmatpush1.bf16.msra.mxu0 0
    %465 = vmatprep.subr.bf16.mxu0 0
    %466 = vmatpush1.bf16.msra.mxu0 0
    %467 = vmatprep.subr.bf16.mxu0 0
    %468 = vmatpush1.bf16.msra.mxu0 0
    %469 = vmatprep.subr.bf16.mxu0 0
    %470 = vmatpush1.bf16.msra.mxu0 0
    %471 = vmatprep.subr.bf16.mxu0 0
    %472 = vmatpush1.bf16.msra.mxu0 0
    %473 = vmatprep.subr.bf16.mxu0 0
    %474 = vmatpush1.bf16.msra.mxu0 0
    %475 = vmatprep.mubr.bf16.mxu0 0
    %476 = vmatmul.mubr.bf16.gmra.mrb[0].mxu0 %v441
    %v477 = vpop.f32.mrb[0].mxu0
    %v478 = vadd.f32 0.0, %v477
    %v479 = vpop.f32.mrb[0].mxu0
    %v480 = vpop.f32.mrb[0].mxu0
    %v481 = vpop.f32.mrb[0].mxu0
    %482 = vdwg.mxu0
    %v483 = vunpack.c.l.bf16 %v427
    %v484 = vadd.f32 %v483, %v478
    %s485 = scalar_lea.vmem [#allocation2], 56
    %v486 = vld [vmem:[%s485 + $0x4] sm:$0xf]
    %v491 = vunpack.c.l.b16 %v416
    %v492 = vunpack.c.l.b16 %v417
    %v493 = vunpack.c.l.b16 %v418
    %v494 = vunpack.c.l.b16 %v419
    %v495 = vpack.c.b16 %v492, %v491
    %v496 = vpack.c.b16 %v494, %v493
    %499 = vmatprep.subr.bf16.mxu0 0
    %500 = vmatpush1.bf16.msra.mxu0 %v495
    %501 = vmatprep.subr.bf16.mxu0 0
    %502 = vmatpush1.bf16.msra.mxu0 %v496
    %503 = vmatprep.subr.bf16.mxu0 0
    %504 = vmatpush1.bf16.msra.mxu0 0
    %505 = vmatprep.subr.bf16.mxu0 0
    %506 = vmatpush1.bf16.msra.mxu0 0
    %507 = vmatprep.subr.bf16.mxu0 0
    %508 = vmatpush1.bf16.msra.mxu0 0
    %509 = vmatprep.subr.bf16.mxu0 0
    %510 = vmatpush1.bf16.msra.mxu0 0
    %511 = vmatprep.subr.bf16.mxu0 0
    %512 = vmatpush1.bf16.msra.mxu0 0
    %513 = vmatprep.subr.bf16.mxu0 0
    %514 = vmatpush1.bf16.msra.mxu0 0
    %515 = vmatprep.subr.bf16.mxu0 0
    %516 = vmatpush1.bf16.msra.mxu0 0
    %517 = vmatprep.subr.bf16.mxu0 0
    %518 = vmatpush1.bf16.msra.mxu0 0
    %519 = vmatprep.subr.bf16.mxu0 0
    %520 = vmatpush1.bf16.msra.mxu0 0
    %521 = vmatprep.subr.bf16.mxu0 0
    %522 = vmatpush1.bf16.msra.mxu0 0
    %523 = vmatprep.subr.bf16.mxu0 0
    %524 = vmatpush1.bf16.msra.mxu0 0
    %525 = vmatprep.subr.bf16.mxu0 0
    %526 = vmatpush1.bf16.msra.mxu0 0
    %527 = vmatprep.subr.bf16.mxu0 0
    %528 = vmatpush1.bf16.msra.mxu0 0
    %529 = vmatprep.subr.bf16.mxu0 0
    %530 = vmatpush1.bf16.msra.mxu0 0
    %531 = vmatprep.mubr.bf16.mxu0 0
    %532 = vmatmul.mubr.bf16.gmra.mrb[0].mxu0 %v441
    %v533 = vpop.f32.mrb[0].mxu0
    %v534 = vadd.f32 0.0, %v533
    %v535 = vpop.f32.mrb[0].mxu0
    %v536 = vpop.f32.mrb[0].mxu0
    %v537 = vpop.f32.mrb[0].mxu0
    %538 = vdwg.mxu0
    %v539 = vunpack.c.l.bf16 %v486
    %v540 = vadd.f32 %v539, %v534
    %v541 = vxor.u32 %v484, 2147483648
    %v542 = vmul.f32 %v541, 1.442695
    %v543 = vpow.pop %v542
    %v544 = vadd.f32 %v543, 1.0
    %v545 = vrcp.pop %v544
    %v546 = vmul.f32 1.0, %v545
    %v547 = vmul.f32 %v546, %v425
    %v548 = vsub.f32 %v547, %v426
    %v549 = vmul.f32 %v548, 0.0
    %551 = vrot.lane.b32.xlu0 %v548, 64
    %v552 = vpop.permute.xlu0 %551
    %v554 = vmul.f32 %v548, %v552
    %556 = vrot.lane.b32.xlu0 %v554, 32
    %v557 = vpop.permute.xlu0 %556
    %v559 = vadd.f32 %v549, %v557
    %v560 = vtanh.pop %v559
    %562 = vrot.lane.b32.xlu0 %v560, 64
    %v563 = vpop.permute.xlu0 %562
    %v565 = vmul.f32 %v548, %v563
    %v566 = vxor.u32 %v540, 2147483648
    %v567 = vmul.f32 %v566, 1.442695
    %v568 = vpow.pop %v567
    %v569 = vadd.f32 %v568, 1.0
    %v570 = vrcp.pop %v569
    %v571 = vmul.f32 1.0, %v570
    %v572 = vmul.f32 %v571, %v425
    %v573 = vsub.f32 %v572, %v426
    %v574 = vmul.f32 %v573, 0.0
    %576 = vrot.lane.b32.xlu0 %v573, 64
    %v577 = vpop.permute.xlu0 %576
    %v579 = vmul.f32 %v573, %v577
    %581 = vrot.lane.b32.xlu0 %v579, 32
    %v582 = vpop.permute.xlu0 %581
    %v584 = vadd.f32 %v574, %v582
    %v585 = vtanh.pop %v584
    %587 = vrot.lane.b32.xlu0 %v585, 64
    %v588 = vpop.permute.xlu0 %587
    %v590 = vmul.f32 %v573, %v588
    %v591 = vpack.c.bf16 %v565, %v565
    %v593 = vunpack.c.l.b16 %v591
    %v594 = vpack.c.b16 %v593, %v593
    %595 = vrot.lane.b32.xlu0 %v594, 32
    %v596 = vpop.permute.xlu0 %595
    %vm598 = vcmask 257024
    %599 = vst.msk [vmem:[#allocation3] sm:$0xf] %vm598, %v596
    %v600 = vpack.c.bf16 %v590, %v590
    %v602 = vunpack.c.l.b16 %v600
    %v603 = vpack.c.b16 %v602, %v602
    %604 = vrot.lane.b32.xlu0 %v603, 64
    %v605 = vpop.permute.xlu0 %604
    %s607 = scalar_lea.vmem [#allocation3], 28
    %vm608 = vcmask 519424
    %609 = vst.msk [vmem:[%s607] sm:$0xf] %vm608, %v605
    %s610 = scalar_lea.vmem [#allocation2], 8
    %v611 = vld [vmem:[%s610] sm:$0xf]
    %612 = vrot.lane.b32.xlu0 %v591, 32
    %v613 = vpop.permute.xlu0 %612
    %v615 = vsel %vm79, %v613, 0
    %617 = vmatprep.subr.bf16.mxu0 0
    %618 = vmatpush1.bf16.msra.mxu0 %v436
    %619 = vmatprep.subr.bf16.mxu0 0
    %620 = vmatpush1.bf16.msra.mxu0 %v437
    %621 = vmatprep.subr.bf16.mxu0 0
    %622 = vmatpush1.bf16.msra.mxu0 0
    %623 = vmatprep.subr.bf16.mxu0 0
    %624 = vmatpush1.bf16.msra.mxu0 0
    %625 = vmatprep.subr.bf16.mxu0 0
    %626 = vmatpush1.bf16.msra.mxu0 0
    %627 = vmatprep.subr.bf16.mxu0 0
    %628 = vmatpush1.bf16.msra.mxu0 0
    %629 = vmatprep.subr.bf16.mxu0 0
    %630 = vmatpush1.bf16.msra.mxu0 0
    %631 = vmatprep.subr.bf16.mxu0 0
    %632 = vmatpush1.bf16.msra.mxu0 0
    %633 = vmatprep.subr.bf16.mxu0 0
    %634 = vmatpush1.bf16.msra.mxu0 0
    %635 = vmatprep.subr.bf16.mxu0 0
    %636 = vmatpush1.bf16.msra.mxu0 0
    %637 = vmatprep.subr.bf16.mxu0 0
    %638 = vmatpush1.bf16.msra.mxu0 0
    %639 = vmatprep.subr.bf16.mxu0 0
    %640 = vmatpush1.bf16.msra.mxu0 0
    %641 = vmatprep.subr.bf16.mxu0 0
    %642 = vmatpush1.bf16.msra.mxu0 0
    %643 = vmatprep.subr.bf16.mxu0 0
    %644 = vmatpush1.bf16.msra.mxu0 0
    %645 = vmatprep.subr.bf16.mxu0 0
    %646 = vmatpush1.bf16.msra.mxu0 0
    %647 = vmatprep.subr.bf16.mxu0 0
    %648 = vmatpush1.bf16.msra.mxu0 0
    %649 = vmatprep.mubr.bf16.mxu0 0
    %650 = vmatmul.mubr.bf16.gmra.mrb[0].mxu0 %v615
    %v651 = vpop.f32.mrb[0].mxu0
    %v652 = vadd.f32 0.0, %v651
    %v653 = vpop.f32.mrb[0].mxu0
    %v654 = vpop.f32.mrb[0].mxu0
    %v655 = vpop.f32.mrb[0].mxu0
    %656 = vdwg.mxu0
    %v657 = vunpack.c.l.bf16 %v611
    %v658 = vadd.f32 %v657, %v652
    %s659 = scalar_lea.vmem [#allocation2], 48
    %v660 = vld [vmem:[%s659 + $0x4] sm:$0xf]
    %661 = vrot.lane.b32.xlu0 %v600, 32
    %v662 = vpop.permute.xlu0 %661
    %v664 = vsel %vm79, %v662, 0
    %666 = vmatprep.subr.bf16.mxu0 0
    %667 = vmatpush1.bf16.msra.mxu0 %v495
    %668 = vmatprep.subr.bf16.mxu0 0
    %669 = vmatpush1.bf16.msra.mxu0 %v496
    %670 = vmatprep.subr.bf16.mxu0 0
    %671 = vmatpush1.bf16.msra.mxu0 0
    %672 = vmatprep.subr.bf16.mxu0 0
    %673 = vmatpush1.bf16.msra.mxu0 0
    %674 = vmatprep.subr.bf16.mxu0 0
    %675 = vmatpush1.bf16.msra.mxu0 0
    %676 = vmatprep.subr.bf16.mxu0 0
    %677 = vmatpush1.bf16.msra.mxu0 0
    %678 = vmatprep.subr.bf16.mxu0 0
    %679 = vmatpush1.bf16.msra.mxu0 0
    %680 = vmatprep.subr.bf16.mxu0 0
    %681 = vmatpush1.bf16.msra.mxu0 0
    %682 = vmatprep.subr.bf16.mxu0 0
    %683 = vmatpush1.bf16.msra.mxu0 0
    %684 = vmatprep.subr.bf16.mxu0 0
    %685 = vmatpush1.bf16.msra.mxu0 0
    %686 = vmatprep.subr.bf16.mxu0 0
    %687 = vmatpush1.bf16.msra.mxu0 0
    %688 = vmatprep.subr.bf16.mxu0 0
    %689 = vmatpush1.bf16.msra.mxu0 0
    %690 = vmatprep.subr.bf16.mxu0 0
    %691 = vmatpush1.bf16.msra.mxu0 0
    %692 = vmatprep.subr.bf16.mxu0 0
    %693 = vmatpush1.bf16.msra.mxu0 0
    %694 = vmatprep.subr.bf16.mxu0 0
    %695 = vmatpush1.bf16.msra.mxu0 0
    %696 = vmatprep.subr.bf16.mxu0 0
    %697 = vmatpush1.bf16.msra.mxu0 0
    %698 = vmatprep.mubr.bf16.mxu0 0
    %699 = vmatmul.mubr.bf16.gmra.mrb[0].mxu0 %v664
    %v700 = vpop.f32.mrb[0].mxu0
    %v701 = vadd.f32 0.0, %v700
    %v702 = vpop.f32.mrb[0].mxu0
    %v703 = vpop.f32.mrb[0].mxu0
    %v704 = vpop.f32.mrb[0].mxu0
    %705 = vdwg.mxu0
    %v706 = vunpack.c.l.bf16 %v660
    %v707 = vadd.f32 %v706, %v701
    %v708 = vxor.u32 %v658, 2147483648
    %v709 = vmul.f32 %v708, 1.442695
    %v710 = vpow.pop %v709
    %v711 = vadd.f32 %v710, 1.0
    %v712 = vrcp.pop %v711
    %v713 = vmul.f32 1.0, %v712
    %v714 = vmul.f32 %v713, %v425
    %v715 = vsub.f32 %v714, %v426
    %v716 = vmul.f32 %v715, %v559
    %718 = vrot.lane.b32.xlu0 %v715, 64
    %v719 = vpop.permute.xlu0 %718
    %v721 = vmul.f32 %v715, %v719
    %723 = vrot.lane.b32.xlu0 %v721, 32
    %v724 = vpop.permute.xlu0 %723
    %v726 = vadd.f32 %v716, %v724
    %v727 = vtanh.pop %v726
    %729 = vrot.lane.b32.xlu0 %v727, 64
    %v730 = vpop.permute.xlu0 %729
    %v732 = vmul.f32 %v715, %v730
    %v733 = vxor.u32 %v707, 2147483648
    %v734 = vmul.f32 %v733, 1.442695
    %v735 = vpow.pop %v734
    %v736 = vadd.f32 %v735, 1.0
    %v737 = vrcp.pop %v736
    %v738 = vmul.f32 1.0, %v737
    %v739 = vmul.f32 %v738, %v425
    %v740 = vsub.f32 %v739, %v426
    %v741 = vmul.f32 %v740, %v584
    %743 = vrot.lane.b32.xlu0 %v740, 64
    %v744 = vpop.permute.xlu0 %743
    %v746 = vmul.f32 %v740, %v744
    %748 = vrot.lane.b32.xlu0 %v746, 32
    %v749 = vpop.permute.xlu0 %748
    %v751 = vadd.f32 %v741, %v749
    %v752 = vtanh.pop %v751
    %754 = vrot.lane.b32.xlu0 %v752, 64
    %v755 = vpop.permute.xlu0 %754
    %v757 = vmul.f32 %v740, %v755
    %v758 = vpack.c.bf16 %v732, %v732
    %v760 = vunpack.c.l.b16 %v758
    %v761 = vpack.c.b16 %v760, %v760
    %762 = vrot.lane.b32.xlu0 %v761, 32
    %v763 = vpop.permute.xlu0 %762
    %s765 = scalar_lea.vmem [#allocation3], 4
    %766 = vst.msk [vmem:[%s765] sm:$0xf] %vm598, %v763
    %v767 = vpack.c.bf16 %v757, %v757
    %v769 = vunpack.c.l.b16 %v767
    %v770 = vpack.c.b16 %v769, %v769
    %771 = vrot.lane.b32.xlu0 %v770, 64
    %v772 = vpop.permute.xlu0 %771
    %s774 = scalar_lea.vmem [#allocation3], 24
    %775 = vst.msk [vmem:[%s774] sm:$0xf] %vm608, %v772
    %s776 = scalar_lea.vmem [#allocation2], 16
    %v777 = vld [vmem:[%s776] sm:$0xf]
    %778 = vrot.lane.b32.xlu0 %v758, 32
    %v779 = vpop.permute.xlu0 %778
    %v781 = vsel %vm79, %v779, 0
    %783 = vmatprep.subr.bf16.mxu0 0
    %784 = vmatpush1.bf16.msra.mxu0 %v436
    %785 = vmatprep.subr.bf16.mxu0 0
    %786 = vmatpush1.bf16.msra.mxu0 %v437
    %787 = vmatprep.subr.bf16.mxu0 0
    %788 = vmatpush1.bf16.msra.mxu0 0
    %789 = vmatprep.subr.bf16.mxu0 0
    %790 = vmatpush1.bf16.msra.mxu0 0
    %791 = vmatprep.subr.bf16.mxu0 0
    %792 = vmatpush1.bf16.msra.mxu0 0
    %793 = vmatprep.subr.bf16.mxu0 0
    %794 = vmatpush1.bf16.msra.mxu0 0
    %795 = vmatprep.subr.bf16.mxu0 0
    %796 = vmatpush1.bf16.msra.mxu0 0
    %797 = vmatprep.subr.bf16.mxu0 0
    %798 = vmatpush1.bf16.msra.mxu0 0
    %799 = vmatprep.subr.bf16.mxu0 0
    %800 = vmatpush1.bf16.msra.mxu0 0
    %801 = vmatprep.subr.bf16.mxu0 0
    %802 = vmatpush1.bf16.msra.mxu0 0
    %803 = vmatprep.subr.bf16.mxu0 0
    %804 = vmatpush1.bf16.msra.mxu0 0
    %805 = vmatprep.subr.bf16.mxu0 0
    %806 = vmatpush1.bf16.msra.mxu0 0
    %807 = vmatprep.subr.bf16.mxu0 0
    %808 = vmatpush1.bf16.msra.mxu0 0
    %809 = vmatprep.subr.bf16.mxu0 0
    %810 = vmatpush1.bf16.msra.mxu0 0
    %811 = vmatprep.subr.bf16.mxu0 0
    %812 = vmatpush1.bf16.msra.mxu0 0
    %813 = vmatprep.subr.bf16.mxu0 0
    %814 = vmatpush1.bf16.msra.mxu0 0
    %815 = vmatprep.mubr.bf16.mxu0 0
    %816 = vmatmul.mubr.bf16.gmra.mrb[0].mxu0 %v781
    %v817 = vpop.f32.mrb[0].mxu0
    %v818 = vadd.f32 0.0, %v817
    %v819 = vpop.f32.mrb[0].mxu0
    %v820 = vpop.f32.mrb[0].mxu0
    %v821 = vpop.f32.mrb[0].mxu0
    %822 = vdwg.mxu0
    %v823 = vunpack.c.l.bf16 %v777
    %v824 = vadd.f32 %v823, %v818
    %s825 = scalar_lea.vmem [#allocation2], 40
    %v826 = vld [vmem:[%s825 + $0x4] sm:$0xf]
    %827 = vrot.lane.b32.xlu0 %v767, 32
    %v828 = vpop.permute.xlu0 %827
    %v830 = vsel %vm79, %v828, 0
    %832 = vmatprep.subr.bf16.mxu0 0
    %833 = vmatpush1.bf16.msra.mxu0 %v495
    %834 = vmatprep.subr.bf16.mxu0 0
    %835 = vmatpush1.bf16.msra.mxu0 %v496
    %836 = vmatprep.subr.bf16.mxu0 0
    %837 = vmatpush1.bf16.msra.mxu0 0
    %838 = vmatprep.subr.bf16.mxu0 0
    %839 = vmatpush1.bf16.msra.mxu0 0
    %840 = vmatprep.subr.bf16.mxu0 0
    %841 = vmatpush1.bf16.msra.mxu0 0
    %842 = vmatprep.subr.bf16.mxu0 0
    %843 = vmatpush1.bf16.msra.mxu0 0
    %844 = vmatprep.subr.bf16.mxu0 0
    %845 = vmatpush1.bf16.msra.mxu0 0
    %846 = vmatprep.subr.bf16.mxu0 0
    %847 = vmatpush1.bf16.msra.mxu0 0
    %848 = vmatprep.subr.bf16.mxu0 0
    %849 = vmatpush1.bf16.msra.mxu0 0
    %850 = vmatprep.subr.bf16.mxu0 0
    %851 = vmatpush1.bf16.msra.mxu0 0
    %852 = vmatprep.subr.bf16.mxu0 0
    %853 = vmatpush1.bf16.msra.mxu0 0
    %854 = vmatprep.subr.bf16.mxu0 0
    %855 = vmatpush1.bf16.msra.mxu0 0
    %856 = vmatprep.subr.bf16.mxu0 0
    %857 = vmatpush1.bf16.msra.mxu0 0
    %858 = vmatprep.subr.bf16.mxu0 0
    %859 = vmatpush1.bf16.msra.mxu0 0
    %860 = vmatprep.subr.bf16.mxu0 0
    %861 = vmatpush1.bf16.msra.mxu0 0
    %862 = vmatprep.subr.bf16.mxu0 0
    %863 = vmatpush1.bf16.msra.mxu0 0
    %864 = vmatprep.mubr.bf16.mxu0 0
    %865 = vmatmul.mubr.bf16.gmra.mrb[0].mxu0 %v830
    %v866 = vpop.f32.mrb[0].mxu0
    %v867 = vadd.f32 0.0, %v866
    %v868 = vpop.f32.mrb[0].mxu0
    %v869 = vpop.f32.mrb[0].mxu0
    %v870 = vpop.f32.mrb[0].mxu0
    %871 = vdwg.mxu0
    %v872 = vunpack.c.l.bf16 %v826
    %v873 = vadd.f32 %v872, %v867
    %v874 = vxor.u32 %v824, 2147483648
    %v875 = vmul.f32 %v874, 1.442695
    %v876 = vpow.pop %v875
    %v877 = vadd.f32 %v876, 1.0
    %v878 = vrcp.pop %v877
    %v879 = vmul.f32 1.0, %v878
    %v880 = vmul.f32 %v879, %v425
    %v881 = vsub.f32 %v880, %v426
    %v882 = vmul.f32 %v881, %v726
    %884 = vrot.lane.b32.xlu0 %v881, 64
    %v885 = vpop.permute.xlu0 %884
    %v887 = vmul.f32 %v881, %v885
    %889 = vrot.lane.b32.xlu0 %v887, 32
    %v890 = vpop.permute.xlu0 %889
    %v892 = vadd.f32 %v882, %v890
    %v893 = vtanh.pop %v892
    %895 = vrot.lane.b32.xlu0 %v893, 64
    %v896 = vpop.permute.xlu0 %895
    %v898 = vmul.f32 %v881, %v896
    %v899 = vxor.u32 %v873, 2147483648
    %v900 = vmul.f32 %v899, 1.442695
    %v901 = vpow.pop %v900
    %v902 = vadd.f32 %v901, 1.0
    %v903 = vrcp.pop %v902
    %v904 = vmul.f32 1.0, %v903
    %v905 = vmul.f32 %v904, %v425
    %v906 = vsub.f32 %v905, %v426
    %v907 = vmul.f32 %v906, %v751
    %909 = vrot.lane.b32.xlu0 %v906, 64
    %v910 = vpop.permute.xlu0 %909
    %v912 = vmul.f32 %v906, %v910
    %914 = vrot.lane.b32.xlu0 %v912, 32
    %v915 = vpop.permute.xlu0 %914
    %v917 = vadd.f32 %v907, %v915
    %v918 = vtanh.pop %v917
    %920 = vrot.lane.b32.xlu0 %v918, 64
    %v921 = vpop.permute.xlu0 %920
    %v923 = vmul.f32 %v906, %v921
    %v924 = vpack.c.bf16 %v898, %v898
    %v926 = vunpack.c.l.b16 %v924
    %v927 = vpack.c.b16 %v926, %v926
    %928 = vrot.lane.b32.xlu0 %v927, 32
    %v929 = vpop.permute.xlu0 %928
    %s931 = scalar_lea.vmem [#allocation3], 8
    %932 = vst.msk [vmem:[%s931] sm:$0xf] %vm598, %v929
    %v933 = vpack.c.bf16 %v923, %v923
    %v935 = vunpack.c.l.b16 %v933
    %v936 = vpack.c.b16 %v935, %v935
    %937 = vrot.lane.b32.xlu0 %v936, 64
    %v938 = vpop.permute.xlu0 %937
    %s940 = scalar_lea.vmem [#allocation3], 20
    %941 = vst.msk [vmem:[%s940] sm:$0xf] %vm608, %v938
    %s942 = scalar_lea.vmem [#allocation2], 24
    %v943 = vld [vmem:[%s942] sm:$0xf]
    %944 = vrot.lane.b32.xlu0 %v924, 32
    %v945 = vpop.permute.xlu0 %944
    %v947 = vsel %vm79, %v945, 0
    %949 = vmatprep.subr.bf16.mxu0 0
    %950 = vmatpush1.bf16.msra.mxu0 %v436
    %951 = vmatprep.subr.bf16.mxu0 0
    %952 = vmatpush1.bf16.msra.mxu0 %v437
    %953 = vmatprep.subr.bf16.mxu0 0
    %954 = vmatpush1.bf16.msra.mxu0 0
    %955 = vmatprep.subr.bf16.mxu0 0
    %956 = vmatpush1.bf16.msra.mxu0 0
    %957 = vmatprep.subr.bf16.mxu0 0
    %958 = vmatpush1.bf16.msra.mxu0 0
    %959 = vmatprep.subr.bf16.mxu0 0
    %960 = vmatpush1.bf16.msra.mxu0 0
    %961 = vmatprep.subr.bf16.mxu0 0
    %962 = vmatpush1.bf16.msra.mxu0 0
    %963 = vmatprep.subr.bf16.mxu0 0
    %964 = vmatpush1.bf16.msra.mxu0 0
    %965 = vmatprep.subr.bf16.mxu0 0
    %966 = vmatpush1.bf16.msra.mxu0 0
    %967 = vmatprep.subr.bf16.mxu0 0
    %968 = vmatpush1.bf16.msra.mxu0 0
    %969 = vmatprep.subr.bf16.mxu0 0
    %970 = vmatpush1.bf16.msra.mxu0 0
    %971 = vmatprep.subr.bf16.mxu0 0
    %972 = vmatpush1.bf16.msra.mxu0 0
    %973 = vmatprep.subr.bf16.mxu0 0
    %974 = vmatpush1.bf16.msra.mxu0 0
    %975 = vmatprep.subr.bf16.mxu0 0
    %976 = vmatpush1.bf16.msra.mxu0 0
    %977 = vmatprep.subr.bf16.mxu0 0
    %978 = vmatpush1.bf16.msra.mxu0 0
    %979 = vmatprep.subr.bf16.mxu0 0
    %980 = vmatpush1.bf16.msra.mxu0 0
    %981 = vmatprep.mubr.bf16.mxu0 0
    %982 = vmatmul.mubr.bf16.gmra.mrb[0].mxu0 %v947
    %v983 = vpop.f32.mrb[0].mxu0
    %v984 = vadd.f32 0.0, %v983
    %v985 = vpop.f32.mrb[0].mxu0
    %v986 = vpop.f32.mrb[0].mxu0
    %v987 = vpop.f32.mrb[0].mxu0
    %988 = vdwg.mxu0
    %v989 = vunpack.c.l.bf16 %v943
    %v990 = vadd.f32 %v989, %v984
    %s991 = scalar_lea.vmem [#allocation2], 32
    %v992 = vld [vmem:[%s991 + $0x4] sm:$0xf]
    %993 = vrot.lane.b32.xlu0 %v933, 32
    %v994 = vpop.permute.xlu0 %993
    %v996 = vsel %vm79, %v994, 0
    %998 = vmatprep.subr.bf16.mxu0 0
    %999 = vmatpush1.bf16.msra.mxu0 %v495
    %1000 = vmatprep.subr.bf16.mxu0 0
    %1001 = vmatpush1.bf16.msra.mxu0 %v496
    %1002 = vmatprep.subr.bf16.mxu0 0
    %1003 = vmatpush1.bf16.msra.mxu0 0
    %1004 = vmatprep.subr.bf16.mxu0 0
    %1005 = vmatpush1.bf16.msra.mxu0 0
    %1006 = vmatprep.subr.bf16.mxu0 0
    %1007 = vmatpush1.bf16.msra.mxu0 0
    %1008 = vmatprep.subr.bf16.mxu0 0
    %1009 = vmatpush1.bf16.msra.mxu0 0
    %1010 = vmatprep.subr.bf16.mxu0 0
    %1011 = vmatpush1.bf16.msra.mxu0 0
    %1012 = vmatprep.subr.bf16.mxu0 0
    %1013 = vmatpush1.bf16.msra.mxu0 0
    %1014 = vmatprep.subr.bf16.mxu0 0
    %1015 = vmatpush1.bf16.msra.mxu0 0
    %1016 = vmatprep.subr.bf16.mxu0 0
    %1017 = vmatpush1.bf16.msra.mxu0 0
    %1018 = vmatprep.subr.bf16.mxu0 0
    %1019 = vmatpush1.bf16.msra.mxu0 0
    %1020 = vmatprep.subr.bf16.mxu0 0
    %1021 = vmatpush1.bf16.msra.mxu0 0
    %1022 = vmatprep.subr.bf16.mxu0 0
    %1023 = vmatpush1.bf16.msra.mxu0 0
    %1024 = vmatprep.subr.bf16.mxu0 0
    %1025 = vmatpush1.bf16.msra.mxu0 0
    %1026 = vmatprep.subr.bf16.mxu0 0
    %1027 = vmatpush1.bf16.msra.mxu0 0
    %1028 = vmatprep.subr.bf16.mxu0 0
    %1029 = vmatpush1.bf16.msra.mxu0 0
    %1030 = vmatprep.mubr.bf16.mxu0 0
    %1031 = vmatmul.mubr.bf16.gmra.mrb[0].mxu0 %v996
    %v1032 = vpop.f32.mrb[0].mxu0
    %v1033 = vadd.f32 0.0, %v1032
    %v1034 = vpop.f32.mrb[0].mxu0
    %v1035 = vpop.f32.mrb[0].mxu0
    %v1036 = vpop.f32.mrb[0].mxu0
    %1037 = vdwg.mxu0
    %v1038 = vunpack.c.l.bf16 %v992
    %v1039 = vadd.f32 %v1038, %v1033
    %v1040 = vxor.u32 %v990, 2147483648
    %v1041 = vmul.f32 %v1040, 1.442695
    %v1042 = vpow.pop %v1041
    %v1043 = vadd.f32 %v1042, 1.0
    %v1044 = vrcp.pop %v1043
    %v1045 = vmul.f32 1.0, %v1044
    %v1046 = vmul.f32 %v1045, %v425
    %v1047 = vsub.f32 %v1046, %v426
    %v1048 = vmul.f32 %v1047, %v892
    %1050 = vrot.lane.b32.xlu0 %v1047, 64
    %v1051 = vpop.permute.xlu0 %1050
    %v1053 = vmul.f32 %v1047, %v1051
    %1055 = vrot.lane.b32.xlu0 %v1053, 32
    %v1056 = vpop.permute.xlu0 %1055
    %v1058 = vadd.f32 %v1048, %v1056
    %v1059 = vtanh.pop %v1058
    %1061 = vrot.lane.b32.xlu0 %v1059, 64
    %v1062 = vpop.permute.xlu0 %1061
    %v1064 = vmul.f32 %v1047, %v1062
    %v1065 = vxor.u32 %v1039, 2147483648
    %v1066 = vmul.f32 %v1065, 1.442695
    %v1067 = vpow.pop %v1066
    %v1068 = vadd.f32 %v1067, 1.0
    %v1069 = vrcp.pop %v1068
    %v1070 = vmul.f32 1.0, %v1069
    %v1071 = vmul.f32 %v1070, %v425
    %v1072 = vsub.f32 %v1071, %v426
    %v1073 = vmul.f32 %v1072, %v917
    %1075 = vrot.lane.b32.xlu0 %v1072, 64
    %v1076 = vpop.permute.xlu0 %1075
    %v1078 = vmul.f32 %v1072, %v1076
    %1080 = vrot.lane.b32.xlu0 %v1078, 32
    %v1081 = vpop.permute.xlu0 %1080
    %v1083 = vadd.f32 %v1073, %v1081
    %v1084 = vtanh.pop %v1083
    %1086 = vrot.lane.b32.xlu0 %v1084, 64
    %v1087 = vpop.permute.xlu0 %1086
    %v1089 = vmul.f32 %v1072, %v1087
    %v1090 = vpack.c.bf16 %v1064, %v1064
    %v1092 = vunpack.c.l.b16 %v1090
    %v1093 = vpack.c.b16 %v1092, %v1092
    %1094 = vrot.lane.b32.xlu0 %v1093, 32
    %v1095 = vpop.permute.xlu0 %1094
    %s1097 = scalar_lea.vmem [#allocation3], 12
    %1098 = vst.msk [vmem:[%s1097] sm:$0xf] %vm598, %v1095
    %v1099 = vpack.c.bf16 %v1089, %v1089
    %v1101 = vunpack.c.l.b16 %v1099
    %v1102 = vpack.c.b16 %v1101, %v1101
    %1103 = vrot.lane.b32.xlu0 %v1102, 64
    %v1104 = vpop.permute.xlu0 %1103
    %s1106 = scalar_lea.vmem [#allocation3], 16
    %1107 = vst.msk [vmem:[%s1106] sm:$0xf] %vm608, %v1104
    %v1108 = vld [vmem:[%s991] sm:$0xf]
    %1109 = vrot.lane.b32.xlu0 %v1090, 32
    %v1110 = vpop.permute.xlu0 %1109
    %v1112 = vsel %vm79, %v1110, 0
    %1114 = vmatprep.subr.bf16.mxu0 0
    %1115 = vmatpush1.bf16.msra.mxu0 %v436
    %1116 = vmatprep.subr.bf16.mxu0 0
    %1117 = vmatpush1.bf16.msra.mxu0 %v437
    %1118 = vmatprep.subr.bf16.mxu0 0
    %1119 = vmatpush1.bf16.msra.mxu0 0
    %1120 = vmatprep.subr.bf16.mxu0 0
    %1121 = vmatpush1.bf16.msra.mxu0 0
    %1122 = vmatprep.subr.bf16.mxu0 0
    %1123 = vmatpush1.bf16.msra.mxu0 0
    %1124 = vmatprep.subr.bf16.mxu0 0
    %1125 = vmatpush1.bf16.msra.mxu0 0
    %1126 = vmatprep.subr.bf16.mxu0 0
    %1127 = vmatpush1.bf16.msra.mxu0 0
    %1128 = vmatprep.subr.bf16.mxu0 0
    %1129 = vmatpush1.bf16.msra.mxu0 0
    %1130 = vmatprep.subr.bf16.mxu0 0
    %1131 = vmatpush1.bf16.msra.mxu0 0
    %1132 = vmatprep.subr.bf16.mxu0 0
    %1133 = vmatpush1.bf16.msra.mxu0 0
    %1134 = vmatprep.subr.bf16.mxu0 0
    %1135 = vmatpush1.bf16.msra.mxu0 0
    %1136 = vmatprep.subr.bf16.mxu0 0
    %1137 = vmatpush1.bf16.msra.mxu0 0
    %1138 = vmatprep.subr.bf16.mxu0 0
    %1139 = vmatpush1.bf16.msra.mxu0 0
    %1140 = vmatprep.subr.bf16.mxu0 0
    %1141 = vmatpush1.bf16.msra.mxu0 0
    %1142 = vmatprep.subr.bf16.mxu0 0
    %1143 = vmatpush1.bf16.msra.mxu0 0
    %1144 = vmatprep.subr.bf16.mxu0 0
    %1145 = vmatpush1.bf16.msra.mxu0 0
    %1146 = vmatprep.mubr.bf16.mxu0 0
    %1147 = vmatmul.mubr.bf16.gmra.mrb[0].mxu0 %v1112
    %v1148 = vpop.f32.mrb[0].mxu0
    %v1149 = vadd.f32 0.0, %v1148
    %v1150 = vpop.f32.mrb[0].mxu0
    %v1151 = vpop.f32.mrb[0].mxu0
    %v1152 = vpop.f32.mrb[0].mxu0
    %1153 = vdwg.mxu0
    %v1154 = vunpack.c.l.bf16 %v1108
    %v1155 = vadd.f32 %v1154, %v1149
    %v1156 = vld [vmem:[%s942 + $0x4] sm:$0xf]
    %1157 = vrot.lane.b32.xlu0 %v1099, 32
    %v1158 = vpop.permute.xlu0 %1157
    %v1160 = vsel %vm79, %v1158, 0
    %1162 = vmatprep.subr.bf16.mxu0 0
    %1163 = vmatpush1.bf16.msra.mxu0 %v495
    %1164 = vmatprep.subr.bf16.mxu0 0
    %1165 = vmatpush1.bf16.msra.mxu0 %v496
    %1166 = vmatprep.subr.bf16.mxu0 0
    %1167 = vmatpush1.bf16.msra.mxu0 0
    %1168 = vmatprep.subr.bf16.mxu0 0
    %1169 = vmatpush1.bf16.msra.mxu0 0
    %1170 = vmatprep.subr.bf16.mxu0 0
    %1171 = vmatpush1.bf16.msra.mxu0 0
    %1172 = vmatprep.subr.bf16.mxu0 0
    %1173 = vmatpush1.bf16.msra.mxu0 0
    %1174 = vmatprep.subr.bf16.mxu0 0
    %1175 = vmatpush1.bf16.msra.mxu0 0
    %1176 = vmatprep.subr.bf16.mxu0 0
    %1177 = vmatpush1.bf16.msra.mxu0 0
    %1178 = vmatprep.subr.bf16.mxu0 0
    %1179 = vmatpush1.bf16.msra.mxu0 0
    %1180 = vmatprep.subr.bf16.mxu0 0
    %1181 = vmatpush1.bf16.msra.mxu0 0
    %1182 = vmatprep.subr.bf16.mxu0 0
    %1183 = vmatpush1.bf16.msra.mxu0 0
    %1184 = vmatprep.subr.bf16.mxu0 0
    %1185 = vmatpush1.bf16.msra.mxu0 0
    %1186 = vmatprep.subr.bf16.mxu0 0
    %1187 = vmatpush1.bf16.msra.mxu0 0
    %1188 = vmatprep.subr.bf16.mxu0 0
    %1189 = vmatpush1.bf16.msra.mxu0 0
    %1190 = vmatprep.subr.bf16.mxu0 0
    %1191 = vmatpush1.bf16.msra.mxu0 0
    %1192 = vmatprep.subr.bf16.mxu0 0
    %1193 = vmatpush1.bf16.msra.mxu0 0
    %1194 = vmatprep.mubr.bf16.mxu0 0
    %1195 = vmatmul.mubr.bf16.gmra.mrb[0].mxu0 %v1160
    %v1196 = vpop.f32.mrb[0].mxu0
    %v1197 = vadd.f32 0.0, %v1196
    %v1198 = vpop.f32.mrb[0].mxu0
    %v1199 = vpop.f32.mrb[0].mxu0
    %v1200 = vpop.f32.mrb[0].mxu0
    %1201 = vdwg.mxu0
    %v1202 = vunpack.c.l.bf16 %v1156
    %v1203 = vadd.f32 %v1202, %v1197
    %v1204 = vxor.u32 %v1155, 2147483648
    %v1205 = vmul.f32 %v1204, 1.442695
    %v1206 = vpow.pop %v1205
    %v1207 = vadd.f32 %v1206, 1.0
    %v1208 = vrcp.pop %v1207
    %v1209 = vmul.f32 1.0, %v1208
    %v1210 = vmul.f32 %v1209, %v425
    %v1211 = vsub.f32 %v1210, %v426
    %v1212 = vmul.f32 %v1211, %v1058
    %1214 = vrot.lane.b32.xlu0 %v1211, 64
    %v1215 = vpop.permute.xlu0 %1214
    %v1217 = vmul.f32 %v1211, %v1215
    %1219 = vrot.lane.b32.xlu0 %v1217, 32
    %v1220 = vpop.permute.xlu0 %1219
    %v1222 = vadd.f32 %v1212, %v1220
    %v1223 = vtanh.pop %v1222
    %1225 = vrot.lane.b32.xlu0 %v1223, 64
    %v1226 = vpop.permute.xlu0 %1225
    %v1228 = vmul.f32 %v1211, %v1226
    %v1229 = vxor.u32 %v1203, 2147483648
    %v1230 = vmul.f32 %v1229, 1.442695
    %v1231 = vpow.pop %v1230
    %v1232 = vadd.f32 %v1231, 1.0
    %v1233 = vrcp.pop %v1232
    %v1234 = vmul.f32 1.0, %v1233
    %v1235 = vmul.f32 %v1234, %v425
    %v1236 = vsub.f32 %v1235, %v426
    %v1237 = vmul.f32 %v1236, %v1083
    %1239 = vrot.lane.b32.xlu0 %v1236, 64
    %v1240 = vpop.permute.xlu0 %1239
    %v1242 = vmul.f32 %v1236, %v1240
    %1244 = vrot.lane.b32.xlu0 %v1242, 32
    %v1245 = vpop.permute.xlu0 %1244
    %v1247 = vadd.f32 %v1237, %v1245
    %v1248 = vtanh.pop %v1247
    %1250 = vrot.lane.b32.xlu0 %v1248, 64
    %v1251 = vpop.permute.xlu0 %1250
    %v1253 = vmul.f32 %v1236, %v1251
    %v1254 = vpack.c.bf16 %v1228, %v1228
    %v1256 = vunpack.c.l.b16 %v1254
    %v1257 = vpack.c.b16 %v1256, %v1256
    %1258 = vrot.lane.b32.xlu0 %v1257, 32
    %v1259 = vpop.permute.xlu0 %1258
    %1261 = vst.msk [vmem:[%s1106] sm:$0xf] %vm598, %v1259
    %v1262 = vpack.c.bf16 %v1253, %v1253
    %v1264 = vunpack.c.l.b16 %v1262
    %v1265 = vpack.c.b16 %v1264, %v1264
    %1266 = vrot.lane.b32.xlu0 %v1265, 64
    %v1267 = vpop.permute.xlu0 %1266
    %1269 = vst.msk [vmem:[%s1097] sm:$0xf] %vm608, %v1267
    %v1270 = vld [vmem:[%s825] sm:$0xf]
    %1271 = vrot.lane.b32.xlu0 %v1254, 32
    %v1272 = vpop.permute.xlu0 %1271
    %v1274 = vsel %vm79, %v1272, 0
    %1276 = vmatprep.subr.bf16.mxu0 0
    %1277 = vmatpush1.bf16.msra.mxu0 %v436
    %1278 = vmatprep.subr.bf16.mxu0 0
    %1279 = vmatpush1.bf16.msra.mxu0 %v437
    %1280 = vmatprep.subr.bf16.mxu0 0
    %1281 = vmatpush1.bf16.msra.mxu0 0
    %1282 = vmatprep.subr.bf16.mxu0 0
    %1283 = vmatpush1.bf16.msra.mxu0 0
    %1284 = vmatprep.subr.bf16.mxu0 0
    %1285 = vmatpush1.bf16.msra.mxu0 0
    %1286 = vmatprep.subr.bf16.mxu0 0
    %1287 = vmatpush1.bf16.msra.mxu0 0
    %1288 = vmatprep.subr.bf16.mxu0 0
    %1289 = vmatpush1.bf16.msra.mxu0 0
    %1290 = vmatprep.subr.bf16.mxu0 0
    %1291 = vmatpush1.bf16.msra.mxu0 0
    %1292 = vmatprep.subr.bf16.mxu0 0
    %1293 = vmatpush1.bf16.msra.mxu0 0
    %1294 = vmatprep.subr.bf16.mxu0 0
    %1295 = vmatpush1.bf16.msra.mxu0 0
    %1296 = vmatprep.subr.bf16.mxu0 0
    %1297 = vmatpush1.bf16.msra.mxu0 0
    %1298 = vmatprep.subr.bf16.mxu0 0
    %1299 = vmatpush1.bf16.msra.mxu0 0
    %1300 = vmatprep.subr.bf16.mxu0 0
    %1301 = vmatpush1.bf16.msra.mxu0 0
    %1302 = vmatprep.subr.bf16.mxu0 0
    %1303 = vmatpush1.bf16.msra.mxu0 0
    %1304 = vmatprep.subr.bf16.mxu0 0
    %1305 = vmatpush1.bf16.msra.mxu0 0
    %1306 = vmatprep.subr.bf16.mxu0 0
    %1307 = vmatpush1.bf16.msra.mxu0 0
    %1308 = vmatprep.mubr.bf16.mxu0 0
    %1309 = vmatmul.mubr.bf16.gmra.mrb[0].mxu0 %v1274
    %v1310 = vpop.f32.mrb[0].mxu0
    %v1311 = vadd.f32 0.0, %v1310
    %v1312 = vpop.f32.mrb[0].mxu0
    %v1313 = vpop.f32.mrb[0].mxu0
    %v1314 = vpop.f32.mrb[0].mxu0
    %1315 = vdwg.mxu0
    %v1316 = vunpack.c.l.bf16 %v1270
    %v1317 = vadd.f32 %v1316, %v1311
    %v1318 = vld [vmem:[%s776 + $0x4] sm:$0xf]
    %1319 = vrot.lane.b32.xlu0 %v1262, 32
    %v1320 = vpop.permute.xlu0 %1319
    %v1322 = vsel %vm79, %v1320, 0
    %1324 = vmatprep.subr.bf16.mxu0 0
    %1325 = vmatpush1.bf16.msra.mxu0 %v495
    %1326 = vmatprep.subr.bf16.mxu0 0
    %1327 = vmatpush1.bf16.msra.mxu0 %v496
    %1328 = vmatprep.subr.bf16.mxu0 0
    %1329 = vmatpush1.bf16.msra.mxu0 0
    %1330 = vmatprep.subr.bf16.mxu0 0
    %1331 = vmatpush1.bf16.msra.mxu0 0
    %1332 = vmatprep.subr.bf16.mxu0 0
    %1333 = vmatpush1.bf16.msra.mxu0 0
    %1334 = vmatprep.subr.bf16.mxu0 0
    %1335 = vmatpush1.bf16.msra.mxu0 0
    %1336 = vmatprep.subr.bf16.mxu0 0
    %1337 = vmatpush1.bf16.msra.mxu0 0
    %1338 = vmatprep.subr.bf16.mxu0 0
    %1339 = vmatpush1.bf16.msra.mxu0 0
    %1340 = vmatprep.subr.bf16.mxu0 0
    %1341 = vmatpush1.bf16.msra.mxu0 0
    %1342 = vmatprep.subr.bf16.mxu0 0
    %1343 = vmatpush1.bf16.msra.mxu0 0
    %1344 = vmatprep.subr.bf16.mxu0 0
    %1345 = vmatpush1.bf16.msra.mxu0 0
    %1346 = vmatprep.subr.bf16.mxu0 0
    %1347 = vmatpush1.bf16.msra.mxu0 0
    %1348 = vmatprep.subr.bf16.mxu0 0
    %1349 = vmatpush1.bf16.msra.mxu0 0
    %1350 = vmatprep.subr.bf16.mxu0 0
    %1351 = vmatpush1.bf16.msra.mxu0 0
    %1352 = vmatprep.subr.bf16.mxu0 0
    %1353 = vmatpush1.bf16.msra.mxu0 0
    %1354 = vmatprep.subr.bf16.mxu0 0
    %1355 = vmatpush1.bf16.msra.mxu0 0
    %1356 = vmatprep.mubr.bf16.mxu0 0
    %1357 = vmatmul.mubr.bf16.gmra.mrb[0].mxu0 %v1322
    %v1358 = vpop.f32.mrb[0].mxu0
    %v1359 = vadd.f32 0.0, %v1358
    %v1360 = vpop.f32.mrb[0].mxu0
    %v1361 = vpop.f32.mrb[0].mxu0
    %v1362 = vpop.f32.mrb[0].mxu0
    %1363 = vdwg.mxu0
    %v1364 = vunpack.c.l.bf16 %v1318
    %v1365 = vadd.f32 %v1364, %v1359
    %v1366 = vxor.u32 %v1317, 2147483648
    %v1367 = vmul.f32 %v1366, 1.442695
    %v1368 = vpow.pop %v1367
    %v1369 = vadd.f32 %v1368, 1.0
    %v1370 = vrcp.pop %v1369
    %v1371 = vmul.f32 1.0, %v1370
    %v1372 = vmul.f32 %v1371, %v425
    %v1373 = vsub.f32 %v1372, %v426
    %v1374 = vmul.f32 %v1373, %v1222
    %1376 = vrot.lane.b32.xlu0 %v1373, 64
    %v1377 = vpop.permute.xlu0 %1376
    %v1379 = vmul.f32 %v1373, %v1377
    %1381 = vrot.lane.b32.xlu0 %v1379, 32
    %v1382 = vpop.permute.xlu0 %1381
    %v1384 = vadd.f32 %v1374, %v1382
    %v1385 = vtanh.pop %v1384
    %1387 = vrot.lane.b32.xlu0 %v1385, 64
    %v1388 = vpop.permute.xlu0 %1387
    %v1390 = vmul.f32 %v1373, %v1388
    %v1391 = vxor.u32 %v1365, 2147483648
    %v1392 = vmul.f32 %v1391, 1.442695
    %v1393 = vpow.pop %v1392
    %v1394 = vadd.f32 %v1393, 1.0
    %v1395 = vrcp.pop %v1394
    %v1396 = vmul.f32 1.0, %v1395
    %v1397 = vmul.f32 %v1396, %v425
    %v1398 = vsub.f32 %v1397, %v426
    %v1399 = vmul.f32 %v1398, %v1247
    %1401 = vrot.lane.b32.xlu0 %v1398, 64
    %v1402 = vpop.permute.xlu0 %1401
    %v1404 = vmul.f32 %v1398, %v1402
    %1406 = vrot.lane.b32.xlu0 %v1404, 32
    %v1407 = vpop.permute.xlu0 %1406
    %v1409 = vadd.f32 %v1399, %v1407
    %v1410 = vtanh.pop %v1409
    %1412 = vrot.lane.b32.xlu0 %v1410, 64
    %v1413 = vpop.permute.xlu0 %1412
    %v1415 = vmul.f32 %v1398, %v1413
    %v1416 = vpack.c.bf16 %v1390, %v1390
    %v1418 = vunpack.c.l.b16 %v1416
    %v1419 = vpack.c.b16 %v1418, %v1418
    %1420 = vrot.lane.b32.xlu0 %v1419, 32
    %v1421 = vpop.permute.xlu0 %1420
    %1423 = vst.msk [vmem:[%s940] sm:$0xf] %vm598, %v1421
    %v1424 = vpack.c.bf16 %v1415, %v1415
    %v1426 = vunpack.c.l.b16 %v1424
    %v1427 = vpack.c.b16 %v1426, %v1426
    %1428 = vrot.lane.b32.xlu0 %v1427, 64
    %v1429 = vpop.permute.xlu0 %1428
    %1431 = vst.msk [vmem:[%s931] sm:$0xf] %vm608, %v1429
    %v1432 = vld [vmem:[%s659] sm:$0xf]
    %1433 = vrot.lane.b32.xlu0 %v1416, 32
    %v1434 = vpop.permute.xlu0 %1433
    %v1436 = vsel %vm79, %v1434, 0
    %1438 = vmatprep.subr.bf16.mxu0 0
    %1439 = vmatpush1.bf16.msra.mxu0 %v436
    %1440 = vmatprep.subr.bf16.mxu0 0
    %1441 = vmatpush1.bf16.msra.mxu0 %v437
    %1442 = vmatprep.subr.bf16.mxu0 0
    %1443 = vmatpush1.bf16.msra.mxu0 0
    %1444 = vmatprep.subr.bf16.mxu0 0
    %1445 = vmatpush1.bf16.msra.mxu0 0
    %1446 = vmatprep.subr.bf16.mxu0 0
    %1447 = vmatpush1.bf16.msra.mxu0 0
    %1448 = vmatprep.subr.bf16.mxu0 0
    %1449 = vmatpush1.bf16.msra.mxu0 0
    %1450 = vmatprep.subr.bf16.mxu0 0
    %1451 = vmatpush1.bf16.msra.mxu0 0
    %1452 = vmatprep.subr.bf16.mxu0 0
    %1453 = vmatpush1.bf16.msra.mxu0 0
    %1454 = vmatprep.subr.bf16.mxu0 0
    %1455 = vmatpush1.bf16.msra.mxu0 0
    %1456 = vmatprep.subr.bf16.mxu0 0
    %1457 = vmatpush1.bf16.msra.mxu0 0
    %1458 = vmatprep.subr.bf16.mxu0 0
    %1459 = vmatpush1.bf16.msra.mxu0 0
    %1460 = vmatprep.subr.bf16.mxu0 0
    %1461 = vmatpush1.bf16.msra.mxu0 0
    %1462 = vmatprep.subr.bf16.mxu0 0
    %1463 = vmatpush1.bf16.msra.mxu0 0
    %1464 = vmatprep.subr.bf16.mxu0 0
    %1465 = vmatpush1.bf16.msra.mxu0 0
    %1466 = vmatprep.subr.bf16.mxu0 0
    %1467 = vmatpush1.bf16.msra.mxu0 0
    %1468 = vmatprep.subr.bf16.mxu0 0
    %1469 = vmatpush1.bf16.msra.mxu0 0
    %1470 = vmatprep.mubr.bf16.mxu0 0
    %1471 = vmatmul.mubr.bf16.gmra.mrb[0].mxu0 %v1436
    %v1472 = vpop.f32.mrb[0].mxu0
    %v1473 = vadd.f32 0.0, %v1472
    %v1474 = vpop.f32.mrb[0].mxu0
    %v1475 = vpop.f32.mrb[0].mxu0
    %v1476 = vpop.f32.mrb[0].mxu0
    %1477 = vdwg.mxu0
    %v1478 = vunpack.c.l.bf16 %v1432
    %v1479 = vadd.f32 %v1478, %v1473
    %v1480 = vld [vmem:[%s610 + $0x4] sm:$0xf]
    %1481 = vrot.lane.b32.xlu0 %v1424, 32
    %v1482 = vpop.permute.xlu0 %1481
    %v1484 = vsel %vm79, %v1482, 0
    %1486 = vmatprep.subr.bf16.mxu0 0
    %1487 = vmatpush1.bf16.msra.mxu0 %v495
    %1488 = vmatprep.subr.bf16.mxu0 0
    %1489 = vmatpush1.bf16.msra.mxu0 %v496
    %1490 = vmatprep.subr.bf16.mxu0 0
    %1491 = vmatpush1.bf16.msra.mxu0 0
    %1492 = vmatprep.subr.bf16.mxu0 0
    %1493 = vmatpush1.bf16.msra.mxu0 0
    %1494 = vmatprep.subr.bf16.mxu0 0
    %1495 = vmatpush1.bf16.msra.mxu0 0
    %1496 = vmatprep.subr.bf16.mxu0 0
    %1497 = vmatpush1.bf16.msra.mxu0 0
    %1498 = vmatprep.subr.bf16.mxu0 0
    %1499 = vmatpush1.bf16.msra.mxu0 0
    %1500 = vmatprep.subr.bf16.mxu0 0
    %1501 = vmatpush1.bf16.msra.mxu0 0
    %1502 = vmatprep.subr.bf16.mxu0 0
    %1503 = vmatpush1.bf16.msra.mxu0 0
    %1504 = vmatprep.subr.bf16.mxu0 0
    %1505 = vmatpush1.bf16.msra.mxu0 0
    %1506 = vmatprep.subr.bf16.mxu0 0
    %1507 = vmatpush1.bf16.msra.mxu0 0
    %1508 = vmatprep.subr.bf16.mxu0 0
    %1509 = vmatpush1.bf16.msra.mxu0 0
    %1510 = vmatprep.subr.bf16.mxu0 0
    %1511 = vmatpush1.bf16.msra.mxu0 0
    %1512 = vmatprep.subr.bf16.mxu0 0
    %1513 = vmatpush1.bf16.msra.mxu0 0
    %1514 = vmatprep.subr.bf16.mxu0 0
    %1515 = vmatpush1.bf16.msra.mxu0 0
    %1516 = vmatprep.subr.bf16.mxu0 0
    %1517 = vmatpush1.bf16.msra.mxu0 0
    %1518 = vmatprep.mubr.bf16.mxu0 0
    %1519 = vmatmul.mubr.bf16.gmra.mrb[0].mxu0 %v1484
    %v1520 = vpop.f32.mrb[0].mxu0
    %v1521 = vadd.f32 0.0, %v1520
    %v1522 = vpop.f32.mrb[0].mxu0
    %v1523 = vpop.f32.mrb[0].mxu0
    %v1524 = vpop.f32.mrb[0].mxu0
    %1525 = vdwg.mxu0
    %v1526 = vunpack.c.l.bf16 %v1480
    %v1527 = vadd.f32 %v1526, %v1521
    %v1528 = vxor.u32 %v1479, 2147483648
    %v1529 = vmul.f32 %v1528, 1.442695
    %v1530 = vpow.pop %v1529
    %v1531 = vadd.f32 %v1530, 1.0
    %v1532 = vrcp.pop %v1531
    %v1533 = vmul.f32 1.0, %v1532
    %v1534 = vmul.f32 %v1533, %v425
    %v1535 = vsub.f32 %v1534, %v426
    %v1536 = vmul.f32 %v1535, %v1384
    %1538 = vrot.lane.b32.xlu0 %v1535, 64
    %v1539 = vpop.permute.xlu0 %1538
    %v1541 = vmul.f32 %v1535, %v1539
    %1543 = vrot.lane.b32.xlu0 %v1541, 32
    %v1544 = vpop.permute.xlu0 %1543
    %v1546 = vadd.f32 %v1536, %v1544
    %v1547 = vtanh.pop %v1546
    %1549 = vrot.lane.b32.xlu0 %v1547, 64
    %v1550 = vpop.permute.xlu0 %1549
    %v1552 = vmul.f32 %v1535, %v1550
    %v1553 = vxor.u32 %v1527, 2147483648
    %v1554 = vmul.f32 %v1553, 1.442695
    %v1555 = vpow.pop %v1554
    %v1556 = vadd.f32 %v1555, 1.0
    %v1557 = vrcp.pop %v1556
    %v1558 = vmul.f32 1.0, %v1557
    %v1559 = vmul.f32 %v1558, %v425
    %v1560 = vsub.f32 %v1559, %v426
    %v1561 = vmul.f32 %v1560, %v1409
    %1563 = vrot.lane.b32.xlu0 %v1560, 64
    %v1564 = vpop.permute.xlu0 %1563
    %v1566 = vmul.f32 %v1560, %v1564
    %1568 = vrot.lane.b32.xlu0 %v1566, 32
    %v1569 = vpop.permute.xlu0 %1568
    %v1571 = vadd.f32 %v1561, %v1569
    %v1572 = vtanh.pop %v1571
    %1574 = vrot.lane.b32.xlu0 %v1572, 64
    %v1575 = vpop.permute.xlu0 %1574
    %v1577 = vmul.f32 %v1560, %v1575
    %v1578 = vpack.c.bf16 %v1552, %v1552
    %v1580 = vunpack.c.l.b16 %v1578
    %v1581 = vpack.c.b16 %v1580, %v1580
    %1582 = vrot.lane.b32.xlu0 %v1581, 32
    %v1583 = vpop.permute.xlu0 %1582
    %1585 = vst.msk [vmem:[%s774] sm:$0xf] %vm598, %v1583
    %v1586 = vpack.c.bf16 %v1577, %v1577
    %v1588 = vunpack.c.l.b16 %v1586
    %v1589 = vpack.c.b16 %v1588, %v1588
    %1590 = vrot.lane.b32.xlu0 %v1589, 64
    %v1591 = vpop.permute.xlu0 %1590
    %1593 = vst.msk [vmem:[%s765] sm:$0xf] %vm608, %v1591
    %v1594 = vld [vmem:[%s485] sm:$0xf]
    %1595 = vrot.lane.b32.xlu0 %v1578, 32
    %v1596 = vpop.permute.xlu0 %1595
    %v1598 = vsel %vm79, %v1596, 0
    %1600 = vmatprep.subr.bf16.mxu0 0
    %1601 = vmatpush1.bf16.msra.mxu0 %v436
    %1602 = vmatprep.subr.bf16.mxu0 0
    %1603 = vmatpush1.bf16.msra.mxu0 %v437
    %1604 = vmatprep.subr.bf16.mxu0 0
    %1605 = vmatpush1.bf16.msra.mxu0 0
    %1606 = vmatprep.subr.bf16.mxu0 0
    %1607 = vmatpush1.bf16.msra.mxu0 0
    %1608 = vmatprep.subr.bf16.mxu0 0
    %1609 = vmatpush1.bf16.msra.mxu0 0
    %1610 = vmatprep.subr.bf16.mxu0 0
    %1611 = vmatpush1.bf16.msra.mxu0 0
    %1612 = vmatprep.subr.bf16.mxu0 0
    %1613 = vmatpush1.bf16.msra.mxu0 0
    %1614 = vmatprep.subr.bf16.mxu0 0
    %1615 = vmatpush1.bf16.msra.mxu0 0
    %1616 = vmatprep.subr.bf16.mxu0 0
    %1617 = vmatpush1.bf16.msra.mxu0 0
    %1618 = vmatprep.subr.bf16.mxu0 0
    %1619 = vmatpush1.bf16.msra.mxu0 0
    %1620 = vmatprep.subr.bf16.mxu0 0
    %1621 = vmatpush1.bf16.msra.mxu0 0
    %1622 = vmatprep.subr.bf16.mxu0 0
    %1623 = vmatpush1.bf16.msra.mxu0 0
    %1624 = vmatprep.subr.bf16.mxu0 0
    %1625 = vmatpush1.bf16.msra.mxu0 0
    %1626 = vmatprep.subr.bf16.mxu0 0
    %1627 = vmatpush1.bf16.msra.mxu0 0
    %1628 = vmatprep.subr.bf16.mxu0 0
    %1629 = vmatpush1.bf16.msra.mxu0 0
    %1630 = vmatprep.subr.bf16.mxu0 0
    %1631 = vmatpush1.bf16.msra.mxu0 0
    %1632 = vmatprep.mubr.bf16.mxu0 0
    %1633 = vmatmul.mubr.bf16.gmra.mrb[0].mxu0 %v1598
    %v1634 = vpop.f32.mrb[0].mxu0
    %v1635 = vadd.f32 0.0, %v1634
    %v1636 = vpop.f32.mrb[0].mxu0
    %v1637 = vpop.f32.mrb[0].mxu0
    %v1638 = vpop.f32.mrb[0].mxu0
    %1639 = vdwg.mxu0
    %v1640 = vunpack.c.l.bf16 %v1594
    %v1641 = vadd.f32 %v1640, %v1635
    %v1642 = vld [vmem:[#allocation2 + $0x4] sm:$0xf]
    %1643 = vrot.lane.b32.xlu0 %v1586, 32
    %v1644 = vpop.permute.xlu0 %1643
    %v1646 = vsel %vm79, %v1644, 0
    %1648 = vmatprep.subr.bf16.mxu0 0
    %1649 = vmatpush1.bf16.msra.mxu0 %v495
    %1650 = vmatprep.subr.bf16.mxu0 0
    %1651 = vmatpush1.bf16.msra.mxu0 %v496
    %1652 = vmatprep.subr.bf16.mxu0 0
    %1653 = vmatpush1.bf16.msra.mxu0 0
    %1654 = vmatprep.subr.bf16.mxu0 0
    %1655 = vmatpush1.bf16.msra.mxu0 0
    %1656 = vmatprep.subr.bf16.mxu0 0
    %1657 = vmatpush1.bf16.msra.mxu0 0
    %1658 = vmatprep.subr.bf16.mxu0 0
    %1659 = vmatpush1.bf16.msra.mxu0 0
    %1660 = vmatprep.subr.bf16.mxu0 0
    %1661 = vmatpush1.bf16.msra.mxu0 0
    %1662 = vmatprep.subr.bf16.mxu0 0
    %1663 = vmatpush1.bf16.msra.mxu0 0
    %1664 = vmatprep.subr.bf16.mxu0 0
    %1665 = vmatpush1.bf16.msra.mxu0 0
    %1666 = vmatprep.subr.bf16.mxu0 0
    %1667 = vmatpush1.bf16.msra.mxu0 0
    %1668 = vmatprep.subr.bf16.mxu0 0
    %1669 = vmatpush1.bf16.msra.mxu0 0
    %1670 = vmatprep.subr.bf16.mxu0 0
    %1671 = vmatpush1.bf16.msra.mxu0 0
    %1672 = vmatprep.subr.bf16.mxu0 0
    %1673 = vmatpush1.bf16.msra.mxu0 0
    %1674 = vmatprep.subr.bf16.mxu0 0
    %1675 = vmatpush1.bf16.msra.mxu0 0
    %1676 = vmatprep.subr.bf16.mxu0 0
    %1677 = vmatpush1.bf16.msra.mxu0 0
    %1678 = vmatprep.subr.bf16.mxu0 0
    %1679 = vmatpush1.bf16.msra.mxu0 0
    %1680 = vmatprep.mubr.bf16.mxu0 0
    %1681 = vmatmul.mubr.bf16.gmra.mrb[0].mxu0 %v1646
    %v1682 = vpop.f32.mrb[0].mxu0
    %v1683 = vadd.f32 0.0, %v1682
    %v1684 = vpop.f32.mrb[0].mxu0
    %v1685 = vpop.f32.mrb[0].mxu0
    %v1686 = vpop.f32.mrb[0].mxu0
    %1687 = vdwg.mxu0
    %v1688 = vunpack.c.l.bf16 %v1642
    %v1689 = vadd.f32 %v1688, %v1683
    %v1690 = vxor.u32 %v1641, 2147483648
    %v1691 = vmul.f32 %v1690, 1.442695
    %v1692 = vpow.pop %v1691
    %v1693 = vadd.f32 %v1692, 1.0
    %v1694 = vrcp.pop %v1693
    %v1695 = vmul.f32 1.0, %v1694
    %v1696 = vmul.f32 %v1695, %v425
    %v1697 = vsub.f32 %v1696, %v426
    %v1698 = vmul.f32 %v1697, %v1546
    %1700 = vrot.lane.b32.xlu0 %v1697, 64
    %v1701 = vpop.permute.xlu0 %1700
    %v1703 = vmul.f32 %v1697, %v1701
    %1705 = vrot.lane.b32.xlu0 %v1703, 32
    %v1706 = vpop.permute.xlu0 %1705
    %v1708 = vadd.f32 %v1698, %v1706
    %v1709 = vtanh.pop %v1708
    %1711 = vrot.lane.b32.xlu0 %v1709, 64
    %v1712 = vpop.permute.xlu0 %1711
    %v1714 = vmul.f32 %v1697, %v1712
    %v1715 = vxor.u32 %v1689, 2147483648
    %v1716 = vmul.f32 %v1715, 1.442695
    %v1717 = vpow.pop %v1716
    %v1718 = vadd.f32 %v1717, 1.0
    %v1719 = vrcp.pop %v1718
    %v1720 = vmul.f32 1.0, %v1719
    %v1721 = vmul.f32 %v1720, %v425
    %v1722 = vsub.f32 %v1721, %v426
    %v1723 = vmul.f32 %v1722, %v1571
    %1725 = vrot.lane.b32.xlu0 %v1722, 64
    %v1726 = vpop.permute.xlu0 %1725
    %v1728 = vmul.f32 %v1722, %v1726
    %1730 = vrot.lane.b32.xlu0 %v1728, 32
    %v1731 = vpop.permute.xlu0 %1730
    %v1733 = vadd.f32 %v1723, %v1731
    %v1734 = vtanh.pop %v1733
    %1736 = vrot.lane.b32.xlu0 %v1734, 64
    %v1737 = vpop.permute.xlu0 %1736
    %v1739 = vmul.f32 %v1722, %v1737
    %v1740 = vpack.c.bf16 %v1714, %v1714
    %v1742 = vunpack.c.l.b16 %v1740
    %v1743 = vpack.c.b16 %v1742, %v1742
    %1744 = vrot.lane.b32.xlu0 %v1743, 32
    %v1745 = vpop.permute.xlu0 %1744
    %1747 = vst.msk [vmem:[%s607] sm:$0xf] %vm598, %v1745
    %v1748 = vpack.c.bf16 %v1739, %v1739
    %v1750 = vunpack.c.l.b16 %v1748
    %v1751 = vpack.c.b16 %v1750, %v1750
    %1752 = vrot.lane.b32.xlu0 %v1751, 64
    %v1753 = vpop.permute.xlu0 %1752
    %1755 = vst.msk [vmem:[#allocation3] sm:$0xf] %vm608, %v1753
    %v1756 = vld [vmem:[#allocation3] sm:$0xf]
    %v1757 = vld [vmem:[#allocation3 + $0x4] sm:$0xf]
    %v1758 = vld [vmem:[#allocation3 + $0x8] sm:$0xf]
    %v1759 = vld [vmem:[#allocation3 + $0xc] sm:$0xf]
    %v1760 = vld [vmem:[#allocation3 + $0x10] sm:$0xf]
    %v1761 = vld [vmem:[#allocation3 + $0x14] sm:$0xf]
    %v1762 = vld [vmem:[#allocation3 + $0x18] sm:$0xf]
    %v1763 = vld [vmem:[#allocation3 + $0x1c] sm:$0xf]
    %v1764 = vld [vmem:[%s7] sm:$0xf]
    %v1765 = vld [vmem:[%s7 + $0x4] sm:$0xf]
    %v1766 = vld [vmem:[%s7 + $0x8] sm:$0xf]
    %v1767 = vld [vmem:[%s7 + $0xc] sm:$0xf]
    %v1768 = vld [vmem:[%s7 + $0x10] sm:$0xf]
    %v1769 = vld [vmem:[%s7 + $0x14] sm:$0xf]
    %v1770 = vld [vmem:[%s7 + $0x18] sm:$0xf]
    %v1771 = vld [vmem:[%s7 + $0x1c] sm:$0xf]
    %v1772 = vld [vmem:[%s8] sm:$0x1]
    %v1774 = vlaneseq
    %v1775 = vshrl.u32 %v1774, 7
    %v1776 = vsub.s32 0, %v1775
    %v1777 = vrot.slane %v1772, %v1776
    %v1787 = vunpack.c.l.b16 %v1756
    %v1788 = vunpack.c.l.b16 %v1757
    %v1789 = vunpack.c.l.b16 %v1758
    %v1790 = vunpack.c.l.b16 %v1759
    %v1791 = vunpack.c.l.b16 %v1760
    %v1792 = vunpack.c.l.b16 %v1761
    %v1793 = vunpack.c.l.b16 %v1762
    %v1794 = vunpack.c.l.b16 %v1763
    %v1795 = vpack.c.b16 %v1788, %v1787
    %v1796 = vpack.c.b16 %v1790, %v1789
    %v1797 = vpack.c.b16 %v1792, %v1791
    %v1798 = vpack.c.b16 %v1794, %v1793
    %v1807 = vunpack.c.l.b16 %v1764
    %v1808 = vunpack.c.l.b16 %v1765
    %v1809 = vunpack.c.l.b16 %v1766
    %v1810 = vunpack.c.l.b16 %v1767
    %v1811 = vunpack.c.l.b16 %v1768
    %v1812 = vunpack.c.l.b16 %v1769
    %v1813 = vunpack.c.l.b16 %v1770
    %v1814 = vunpack.c.l.b16 %v1771
    %v1815 = vpack.c.b16 %v1808, %v1807
    %v1816 = vpack.c.b16 %v1810, %v1809
    %v1817 = vpack.c.b16 %v1812, %v1811
    %v1818 = vpack.c.b16 %v1814, %v1813
    %vm1823 = vcmask 523264
    %v1825 = vsel %vm1823, %v1795, 0
    %v1828 = vsel %vm1823, %v1796, 0
    %v1831 = vsel %vm1823, %v1797, 0
    %v1834 = vsel %vm1823, %v1798, 0
    %1836 = vmatprep.subr.bf16.mxu0 0
    %1837 = vmatpush1.bf16.msra.mxu0 %v1815
    %1838 = vmatprep.subr.bf16.mxu0 0
    %1839 = vmatpush1.bf16.msra.mxu0 %v1816
    %1840 = vmatprep.subr.bf16.mxu0 0
    %1841 = vmatpush1.bf16.msra.mxu0 %v1817
    %1842 = vmatprep.subr.bf16.mxu0 0
    %1843 = vmatpush1.bf16.msra.mxu0 %v1818
    %1844 = vmatprep.subr.bf16.mxu0 0
    %1845 = vmatpush1.bf16.msra.mxu0 0
    %1846 = vmatprep.subr.bf16.mxu0 0
    %1847 = vmatpush1.bf16.msra.mxu0 0
    %1848 = vmatprep.subr.bf16.mxu0 0
    %1849 = vmatpush1.bf16.msra.mxu0 0
    %1850 = vmatprep.subr.bf16.mxu0 0
    %1851 = vmatpush1.bf16.msra.mxu0 0
    %1852 = vmatprep.subr.bf16.mxu0 0
    %1853 = vmatpush1.bf16.msra.mxu0 0
    %1854 = vmatprep.subr.bf16.mxu0 0
    %1855 = vmatpush1.bf16.msra.mxu0 0
    %1856 = vmatprep.subr.bf16.mxu0 0
    %1857 = vmatpush1.bf16.msra.mxu0 0
    %1858 = vmatprep.subr.bf16.mxu0 0
    %1859 = vmatpush1.bf16.msra.mxu0 0
    %1860 = vmatprep.subr.bf16.mxu0 0
    %1861 = vmatpush1.bf16.msra.mxu0 0
    %1862 = vmatprep.subr.bf16.mxu0 0
    %1863 = vmatpush1.bf16.msra.mxu0 0
    %1864 = vmatprep.subr.bf16.mxu0 0
    %1865 = vmatpush1.bf16.msra.mxu0 0
    %1866 = vmatprep.subr.bf16.mxu0 0
    %1867 = vmatpush1.bf16.msra.mxu0 0
    %1868 = vmatprep.mubr.bf16.mxu0 0
    %1869 = vmatmul.mubr.bf16.gmra.mrb[0].mxu0 %v1825
    %v1870 = vpop.f32.mrb[0].mxu0
    %v1871 = vadd.f32 %v1777, %v1870
    %v1872 = vpop.f32.mrb[0].mxu0
    %v1873 = vpop.f32.mrb[0].mxu0
    %v1874 = vadd.f32 %v1777, %v1873
    %v1875 = vpop.f32.mrb[0].mxu0
    %1876 = vmatprep.mubr.bf16.mxu0 0
    %1877 = vmatmul.mubr.bf16.gmra.mrb[0].mxu0 %v1828
    %v1878 = vpop.f32.mrb[0].mxu0
    %v1879 = vadd.f32 %v1777, %v1878
    %v1880 = vpop.f32.mrb[0].mxu0
    %v1881 = vpop.f32.mrb[0].mxu0
    %v1882 = vadd.f32 %v1777, %v1881
    %v1883 = vpop.f32.mrb[0].mxu0
    %1884 = vmatprep.mubr.bf16.mxu0 0
    %1885 = vmatmul.mubr.bf16.gmra.mrb[0].mxu0 %v1831
    %v1886 = vpop.f32.mrb[0].mxu0
    %v1887 = vadd.f32 %v1777, %v1886
    %v1888 = vpop.f32.mrb[0].mxu0
    %v1889 = vpop.f32.mrb[0].mxu0
    %v1890 = vadd.f32 %v1777, %v1889
    %v1891 = vpop.f32.mrb[0].mxu0
    %1892 = vmatprep.mubr.bf16.mxu0 0
    %1893 = vmatmul.mubr.bf16.gmra.mrb[0].mxu0 %v1834
    %v1894 = vpop.f32.mrb[0].mxu0
    %v1895 = vadd.f32 %v1777, %v1894
    %v1896 = vpop.f32.mrb[0].mxu0
    %v1897 = vpop.f32.mrb[0].mxu0
    %v1898 = vadd.f32 %v1777, %v1897
    %v1899 = vpop.f32.mrb[0].mxu0
    %1900 = vdwg.mxu0
    %v1901 = vadd.f32 %v1871, %v71
    %v1902 = vadd.f32 %v1874, %v72
    %v1903 = vadd.f32 %v1879, %v73
    %v1904 = vadd.f32 %v1882, %v74
    %v1905 = vadd.f32 %v1887, %v75
    %v1906 = vadd.f32 %v1890, %v76
    %v1907 = vadd.f32 %v1895, %v77
    %v1908 = vadd.f32 %v1898, %v78
    %1909 = vst.msk [vmem:[#allocation10] sm:$0xff] %vm79, %v1901
    %1910 = vst.msk [vmem:[#allocation10 + $0x8] sm:$0xff] %vm79, %v1902
    %1911 = vst.msk [vmem:[#allocation10 + $0x10] sm:$0xff] %vm79, %v1903
    %1912 = vst.msk [vmem:[#allocation10 + $0x18] sm:$0xff] %vm79, %v1904
    %1913 = vst.msk [vmem:[#allocation10 + $0x20] sm:$0xff] %vm79, %v1905
    %1914 = vst.msk [vmem:[#allocation10 + $0x28] sm:$0xff] %vm79, %v1906
    %1915 = vst.msk [vmem:[#allocation10 + $0x30] sm:$0xff] %vm79, %v1907
    %1916 = vst.msk [vmem:[#allocation10 + $0x38] sm:$0xff] %vm79, %v1908
    // Predicated region
    $region50: #{tpu_custom_call.1} parent=1 // pred_check
      _
    $region51: #{tpu_custom_call.1} parent=1 // pred_check_branch
      %1918 = sbr.rel (0) target = $region53
    $region52: #{tpu_custom_call.1} parent=1 // pred_region
      %s1920 = ssub.s32 1024, 1024
      %1921 = vsyncadd [#allocation6], %s1920
      %s1922 = sshll.u32 [#allocation10], 4
      %s1923 = int_to_ptr.vmem [resolvable:$true] %s1922
      %1928 = dma.vmem_to_hbm [thread:$0]  %s1923, 1024, %s9, [#allocation6], 128, 128, 8
    $region53: #{tpu_custom_call.1} parent=1 // pred_fallthru
      _
    // Predicated region
    $region54: #{tpu_custom_call.1} parent=1 // pred_check
      _
    $region55: #{tpu_custom_call.1} parent=1 // pred_check_branch
      %1930 = sbr.rel (0) target = $region57
    $region56: #{tpu_custom_call.1} parent=1 // pred_region
      %1931 = dma.done [#allocation6], 1024
    $region57: #{tpu_custom_call.1} parent=1 // pred_fallthru
      _
    %1932 = vsyncpa [#allocation5], 1
    %1933 = vsyncpa [#allocation8], 1
    %1934 = vsyncpa [#allocation6], 1

</llo_original>
